<compile_context>
chip_gen: v5e
topology: v5e:2x2
jax: 0.10.0
libtpu: 0.0.40
codegen_flags: <defaults>
</compile_context>

<pallas_src>
import math

import jax
import jax.numpy as jnp
from jax.experimental import pallas as pl
from jax.experimental.pallas import tpu as pltpu


def _round_up(v: int, m: int) -> int:
    return ((v + m - 1) // m) * m


def _make_kernel(x_dim: int, latent: int, use_identity: bool, out_dtype):
    """scale/phase: (1, latent); x: (TR, x_dim) -> o: (TR, latent)."""

    def kernel(scale_ref, phase_ref, x_ref, o_ref):
        x = x_ref[...].astype(jnp.float32)                    # (TR, x_dim)
        tr = x.shape[0]

        # lane index and "which x-dim does this output lane use"
        col = jax.lax.broadcasted_iota(jnp.int32, (tr, latent), 1)
        dim_idx = col % x_dim

        # Replicate x across the latent lane groups: x_rep[:, j] = x[:, j % x_dim]
        x_rep = jnp.broadcast_to(x[:, 0:1], (tr, latent))
        for d in range(1, x_dim):
            x_rep = jnp.where(dim_idx == d, x[:, d:d + 1], x_rep)

        sc = scale_ref[...].astype(jnp.float32)               # (1, latent)
        ph = phase_ref[...].astype(jnp.float32)               # (1, latent)
        res = jnp.sin(x_rep * sc + ph)                        # exact per degree

        if use_identity:
            # first x_dim lanes are the identity copy of x
            res = jnp.where(col < x_dim, x_rep, res)

        o_ref[...] = res.astype(out_dtype)

    return kernel


class SinusoidalEncoderPallas:
    """JAX/Pallas port of conerf SinusoidalEncoder (forward semantics kept)."""

    def __init__(self, x_dim, min_deg, max_deg, use_identity: bool = True):
        self.x_dim = x_dim
        self.min_deg = min_deg
        self.max_deg = max_deg
        self.use_identity = use_identity
        # deterministic "buffer" (same as torch register_buffer of 2**i)
        self.scales = [float(2 ** i) for i in range(min_deg, max_deg)]

    @property
    def latent_dim(self) -> int:
        return (int(self.use_identity)
                + (self.max_deg - self.min_deg) * 2) * self.x_dim

    # ---- helpers -----------------------------------------------------------
    def _lane_tables(self):
        """Per-output-lane scale and phase, matching the torch concat order."""
        num_deg = self.max_deg - self.min_deg
        id_off = 1 if self.use_identity else 0
        lane_scale = [1.0] * (id_off * self.x_dim)
        lane_phase = [0.0] * (id_off * self.x_dim)
        for phase in (0.0, 0.5 * math.pi):          # sin block, then cos block
            for p in range(num_deg):
                s = float(2.0 ** (self.min_deg + p))
                lane_scale += [s] * self.x_dim
                lane_phase += [phase] * self.x_dim
        return lane_scale, lane_phase

    def _pick_row_tile(self, n: int, latent: int, max_rows: int) -> int:
        # conservative VMEM budget (fits v5e/v6e/v7x scoped defaults easily)
        lane_pad_out = _round_up(latent, 128)
        lane_pad_in = _round_up(self.x_dim, 128)
        bytes_per_row = (lane_pad_out + lane_pad_in) * 4 * 2   # double-buffered
        budget = 16 * 1024 * 1024
        cap = max(8, (budget // bytes_per_row) // 8 * 8)
        tr = min(max_rows, cap, _round_up(n, 8))
        tr = max(8, (tr // 8) * 8)
        # Prefer >= 2 grid steps so the "parallel" axis can use both TCs (v7x).
        if n >= 16 and pl.cdiv(n, tr) < 2:
            tr = max(8, _round_up(pl.cdiv(n, 2), 8))
        return tr

    # ---- forward -----------------------------------------------------------
    def __call__(self, x, *, max_rows: int = 2048):
        if self.max_deg == self.min_deg:
            # Mirrors the odd-but-intentional PyTorch behavior: return x as-is.
            return x

        orig_shape = x.shape
        assert orig_shape[-1] == self.x_dim
        n = math.prod(orig_shape[:-1]) if len(orig_shape) > 1 else 1
        latent = self.latent_dim

        # Free row-major view; no transpose.
        x2 = jnp.reshape(x, (n, self.x_dim))

        tr = self._pick_row_tile(n, latent, max_rows)
        n_pad = pl.cdiv(n, tr) * tr
        if n_pad != n:
            x2 = jnp.pad(x2, ((0, n_pad - n), (0, 0)))

        lane_scale, lane_phase = self._lane_tables()
        scale_arr = jnp.asarray(lane_scale, jnp.float32).reshape(1, latent)
        phase_arr = jnp.asarray(lane_phase, jnp.float32).reshape(1, latent)

        kernel = _make_kernel(self.x_dim, latent, self.use_identity, x.dtype)

        out = pl.pallas_call(
            kernel,
            out_shape=jax.ShapeDtypeStruct((n_pad, latent), x.dtype),
            grid_spec=pltpu.PrefetchScalarGridSpec(
                num_scalar_prefetch=0,
                grid=(n_pad // tr,),
                in_specs=[
                    pl.BlockSpec((1, latent), lambda i: (0, 0)),        # scale
                    pl.BlockSpec((1, latent), lambda i: (0, 0)),        # phase
                    pl.BlockSpec((tr, self.x_dim), lambda i: (i, 0)),   # x rows
                ],
                out_specs=pl.BlockSpec((tr, latent), lambda i: (i, 0)),
            ),
            compiler_params=pltpu.CompilerParams(
                dimension_semantics=("parallel",)),
        )(scale_arr, phase_arr, x2)

        if n_pad != n:
            out = out[:n]
        return jnp.reshape(out, orig_shape[:-1] + (latent,))


def _reference(x, min_deg, max_deg, use_identity):
    """Pure-JAX reference mirroring the torch forward exactly."""
    if max_deg == min_deg:
        return x
    num_deg = max_deg - min_deg
    x_dim = x.shape[-1]
    sc = jnp.asarray([2.0 ** i for i in range(min_deg, max_deg)], dtype=x.dtype)
    xb = jnp.reshape(x[..., None, :] * sc[:, None],
                     x.shape[:-1] + (num_deg * x_dim,))
    latent = jnp.sin(jnp.concatenate([xb, xb + 0.5 * math.pi], axis=-1))
    if use_identity:
        latent = jnp.concatenate([x, latent], axis=-1)
    return latent


if __name__ == "__main__":
    key = jax.random.PRNGKey(0)
    x_dim, min_deg, max_deg = 3, 0, 4
    enc = SinusoidalEncoderPallas(x_dim, min_deg, max_deg, use_identity=True)

    # test 1: typical shape (batch=2, 64 samples, x_dim=3)
    x = jax.random.normal(key, (2, 64, x_dim), dtype=jnp.float32)
    out = jax.block_until_ready(enc(x))
    ref = _reference(x, min_deg, max_deg, True)
    assert out.shape == (2, 64, enc.latent_dim), out.shape
    assert jnp.allclose(out, ref, atol=5e-5, rtol=1e-5), \
        float(jnp.max(jnp.abs(out - ref)))

    # test 2: non-power-of-two row count exercises the row-pad path
    x2 = jax.random.normal(jax.random.PRNGKey(1), (1, 50, x_dim),
                           dtype=jnp.float32)
    out2 = jax.block_until_ready(enc(x2))
    ref2 = _reference(x2, min_deg, max_deg, True)
    assert out2.shape == (1, 50, enc.latent_dim), out2.shape
    assert jnp.allclose(out2, ref2, atol=5e-5, rtol=1e-5), \
        float(jnp.max(jnp.abs(out2 - ref2)))

    # test 3: degenerate max_deg == min_deg returns x unchanged (torch parity)
    enc_id = SinusoidalEncoderPallas(x_dim, 2, 2, use_identity=True)
    out3 = enc_id(x)
    assert out3.shape == x.shape

    print("KERNEL_OK")
</pallas_src>

<mosaic_0001>
module attributes {stable_mosaic.version = 11 : i64} {
  func.func @kernel(%arg0: i32, %arg1: memref<1x27xf32, #tpu.memory_space<vmem>>, %arg2: memref<1x27xf32, #tpu.memory_space<vmem>>, %arg3: memref<64x3xf32, #tpu.memory_space<vmem>>, %arg4: memref<64x27xf32, #tpu.memory_space<vmem>>) attributes {dimension_semantics = [#tpu.dimension_semantics<parallel>], iteration_bounds = array<i64: 2>, scalar_prefetch = 0 : i64, scratch_operands = 0 : i64, tpu.core_type = #tpu.core_type<tc>, window_params = [{pipeline_mode = #tpu.pipeline_mode<synchronous>, transform_indices = @transform_0, window_bounds = array<i64: 1, 27>}, {pipeline_mode = #tpu.pipeline_mode<synchronous>, transform_indices = @transform_1, window_bounds = array<i64: 1, 27>}, {transform_indices = @transform_2, window_bounds = array<i64: 64, 3>}, {transform_indices = @transform_3, window_bounds = array<i64: 64, 27>}]} {
    %c0 = arith.constant 0 : index
    %c0_0 = arith.constant 0 : index
    %0 = vector.load %arg3[%c0, %c0_0] : memref<64x3xf32, #tpu.memory_space<vmem>>, vector<64x3xf32>
    %1 = tpu.iota {dimensions = array<i32: 1>} : vector<64x27xi32>
    %c3_i32 = arith.constant 3 : i32
    %c0_i32 = arith.constant 0 : i32
    %2 = arith.cmpi eq, %c3_i32, %c0_i32 : i32
    %c1_i32 = arith.constant 1 : i32
    %3 = arith.select %2, %c1_i32, %c3_i32 : i32
    %4 = vector.broadcast %3 : i32 to vector<64x27xi32>
    %5 = arith.remsi %1, %4 : vector<64x27xi32>
    %c0_i32_1 = arith.constant 0 : i32
    %6 = vector.broadcast %c0_i32_1 : i32 to vector<64x27xi32>
    %7 = arith.cmpi ne, %5, %6 : vector<64x27xi32>
    %c0_i32_2 = arith.constant 0 : i32
    %8 = vector.broadcast %c0_i32_2 : i32 to vector<64x27xi32>
    %9 = arith.cmpi slt, %5, %8 : vector<64x27xi32>
    %c0_i32_3 = arith.constant 0 : i32
    %10 = arith.cmpi slt, %3, %c0_i32_3 : i32
    %11 = vector.broadcast %10 : i1 to vector<64x27xi1>
    %12 = vector.broadcast %11 : vector<64x27xi1> to vector<64x27xi1>
    %13 = arith.xori %9, %12 : vector<64x27xi1>
    %14 = arith.andi %13, %7 : vector<64x27xi1>
    %15 = vector.broadcast %3 : i32 to vector<64x27xi32>
    %16 = arith.addi %5, %15 : vector<64x27xi32>
    %17 = arith.select %14, %16, %5 : vector<64x27xi1>, vector<64x27xi32>
    %18 = vector.extract_strided_slice %0 {offsets = [0, 0], sizes = [64, 1], strides = [1, 1]} : vector<64x3xf32> to vector<64x1xf32>
    %19 = vector.shape_cast %18 : vector<64x1xf32> to vector<64x1xf32>
    %20 = vector.broadcast %19 : vector<64x1xf32> to vector<64x27xf32>
    %c1_i32_4 = arith.constant 1 : i32
    %21 = vector.broadcast %c1_i32_4 : i32 to vector<64x27xi32>
    %22 = arith.cmpi eq, %17, %21 : vector<64x27xi32>
    %23 = vector.extract_strided_slice %0 {offsets = [0, 1], sizes = [64, 1], strides = [1, 1]} : vector<64x3xf32> to vector<64x1xf32>
    %24 = vector.shape_cast %23 : vector<64x1xf32> to vector<64x1xf32>
    %25 = vector.broadcast %24 : vector<64x1xf32> to vector<64x27xf32>
    %26 = arith.select %22, %25, %20 : vector<64x27xi1>, vector<64x27xf32>
    %c2_i32 = arith.constant 2 : i32
    %27 = vector.broadcast %c2_i32 : i32 to vector<64x27xi32>
    %28 = arith.cmpi eq, %17, %27 : vector<64x27xi32>
    %29 = vector.extract_strided_slice %0 {offsets = [0, 2], sizes = [64, 1], strides = [1, 1]} : vector<64x3xf32> to vector<64x1xf32>
    %30 = vector.shape_cast %29 : vector<64x1xf32> to vector<64x1xf32>
    %31 = vector.broadcast %30 : vector<64x1xf32> to vector<64x27xf32>
    %32 = arith.select %28, %31, %26 : vector<64x27xi1>, vector<64x27xf32>
    %c0_5 = arith.constant 0 : index
    %c0_6 = arith.constant 0 : index
    %33 = vector.load %arg1[%c0_5, %c0_6] : memref<1x27xf32, #tpu.memory_space<vmem>>, vector<1x27xf32>
    %c0_7 = arith.constant 0 : index
    %c0_8 = arith.constant 0 : index
    %34 = vector.load %arg2[%c0_7, %c0_8] : memref<1x27xf32, #tpu.memory_space<vmem>>, vector<1x27xf32>
    %35 = vector.broadcast %33 : vector<1x27xf32> to vector<64x27xf32>
    %36 = arith.mulf %32, %35 : vector<64x27xf32>
    %37 = vector.broadcast %34 : vector<1x27xf32> to vector<64x27xf32>
    %38 = arith.addf %36, %37 : vector<64x27xf32>
    %39 = math.sin %38 : vector<64x27xf32>
    %c3_i32_9 = arith.constant 3 : i32
    %40 = vector.broadcast %c3_i32_9 : i32 to vector<64x27xi32>
    %41 = arith.cmpi slt, %1, %40 : vector<64x27xi32>
    %42 = arith.select %41, %32, %39 : vector<64x27xi1>, vector<64x27xf32>
    %c0_10 = arith.constant 0 : index
    %c0_11 = arith.constant 0 : index
    %43 = vector.load %arg4[%c0_10, %c0_11] : memref<64x27xf32, #tpu.memory_space<vmem>>, vector<64x27xf32>
    tpu.vector_store %arg4[%c0_10, %c0_11], %42 {strides = array<i32>} : memref<64x27xf32, #tpu.memory_space<vmem>>, vector<64x27xf32>,
    return
  }
  func.func @transform_0(%arg0: i32) -> (i32, i32) {
    %c0_i32 = arith.constant 0 : i32
    %c0_i32_0 = arith.constant 0 : i32
    %c0_i32_1 = arith.constant 0 : i32
    return %c0_i32, %c0_i32_0 : i32, i32
  }
  func.func @transform_1(%arg0: i32) -> (i32, i32) {
    %c0_i32 = arith.constant 0 : i32
    %c0_i32_0 = arith.constant 0 : i32
    %c0_i32_1 = arith.constant 0 : i32
    return %c0_i32, %c0_i32_0 : i32, i32
  }
  func.func @transform_2(%arg0: i32) -> (i32, i32) {
    %c0_i32 = arith.constant 0 : i32
    %c0_i32_0 = arith.constant 0 : i32
    return %arg0, %c0_i32 : i32, i32
  }
  func.func @transform_3(%arg0: i32) -> (i32, i32) {
    %c0_i32 = arith.constant 0 : i32
    %c0_i32_0 = arith.constant 0 : i32
    return %arg0, %c0_i32 : i32, i32
  }
}

</mosaic_0001>

<llo_original>
// kernel: tpu_custom_call.1
$region0: #{tpu_custom_call.1}
  #allocation0 [shape = 'u32[]', space=smem, size = 0x4, offset = 0x4, fixed_abs, tag = 'smem constant byte address 0x4 - core index']
  #allocation1 [shape = 'u32[72,128]{1,0:T(1,128)}', space=vmem, size = 0x9000, scoped, tag = 'internal scratch']
  %s0 = inlined_call_operand.vmem [shape: f32[1,27], index: 0, kind: input, shape index: {}]
  %s1 = inlined_call_operand.vmem [shape: f32[1,27], index: 1, kind: input, shape index: {}]
  %s2 = inlined_call_operand.vmem [shape: f32[128,3], index: 2, kind: input, shape index: {}]
  %s3 = inlined_call_operand.vmem [shape: f32[128,27], index: 3, kind: output, shape index: {}]
  %s4 = sld [smem:[#allocation0]]
  $region45: #{tpu_custom_call.1} parent=0
    _
  %s6 = ssub.s32 1, %s4
  %s7 = scalar_select 0, %s6, %s4
  loop: start=0, step=1, limit=4
  $region2: #{tpu_custom_call.1} parent=0 // loop_pre_header
    _
  $region3: #{tpu_custom_call.1} parent=0 // loop_header
    %s9 = sphi 0, %s13
    %p10 = scmp.ge.s32.totalorder %s9, 4
    %s17 = sphi 0, %s17
    %s19 = sphi 0, %s17
    %s20 = sphi 0, %s19
    %s34 = sphi 0, %s20
    %s38 = sphi 0, %s38
    %s40 = sphi 0, %s38
    %s41 = sphi 0, %s40
    %s55 = sphi 0, %s41
    %s61 = sphi 0, %s63
    %s64 = sphi 0, %s61
    %s65 = sphi 0, %s64
    %s81 = sphi 0, %s65
    %s87 = sphi 0, %s89
    %s90 = sphi 0, %s87
    %s91 = sphi 0, %s90
    %s107 = sphi 0, %s91
  $region4: #{tpu_custom_call.1} parent=0 // loop_header_branch
    %12 = sbr.rel (%p10) target = $region8
  $region5: #{tpu_custom_call.1} parent=0 // loop_body
    %s14 = ssub.s32 %s9, 1
    %s15 = ssub.s32 %s9, 2
    %s16 = sadd.s32 %s9, 1
    %s18 = sadd.s32 %s17, 1
    %p21 = scmp.eq.s32.totalorder %s9, 1
    %p22 = scmp.ne.s32.totalorder %s17, %s19
    %p23 = scmp.eq.s32.totalorder %s9, 0
    %p24 = por %p22, %p23
    %p25 = scmp.ne.s32.totalorder %s17, %s19
    %p26 = scmp.eq.s32.totalorder %s14, 1
    %p27 = por %p25, %p26
    %p28 = scmp.ne.s32.totalorder %s19, %s20
    %p29 = scmp.eq.s32.totalorder %s14, 0
    %p30 = por %p28, %p29
    %p31 = scmp.ne.s32.totalorder %s19, %s20
    %p32 = scmp.eq.s32.totalorder %s15, 1
    %p33 = por %p31, %p32
    %p35 = scmp.ne.s32.totalorder %s20, %s34
    %p36 = scmp.eq.s32.totalorder %s15, 0
    %p37 = por %p35, %p36
    %s39 = sadd.s32 %s38, 1
    %p42 = scmp.eq.s32.totalorder %s9, 1
    %p43 = scmp.ne.s32.totalorder %s38, %s40
    %p44 = scmp.eq.s32.totalorder %s9, 0
    %p45 = por %p43, %p44
    %p46 = scmp.ne.s32.totalorder %s38, %s40
    %p47 = scmp.eq.s32.totalorder %s14, 1
    %p48 = por %p46, %p47
    %p49 = scmp.ne.s32.totalorder %s40, %s41
    %p50 = scmp.eq.s32.totalorder %s14, 0
    %p51 = por %p49, %p50
    %p52 = scmp.ne.s32.totalorder %s40, %s41
    %p53 = scmp.eq.s32.totalorder %s15, 1
    %p54 = por %p52, %p53
    %p56 = scmp.ne.s32.totalorder %s41, %s55
    %p57 = scmp.eq.s32.totalorder %s15, 0
    %p58 = por %p56, %p57
    %s59 = ssub.s32 %s9, %s16
    %p60 = scmp.eq.s32.totalorder %s59, 0
    %s62 = sadd.s32 %s61, 1
    %s63 = scalar_select %p60, %s61, %s62
    %p66 = pneg %p60
    %p67 = scmp.eq.s32.totalorder %s9, 1
    %p68 = por %p66, %p67
    %p69 = scmp.ne.s32.totalorder %s61, %s64
    %p70 = scmp.eq.s32.totalorder %s9, 0
    %p71 = por %p69, %p70
    %p72 = scmp.ne.s32.totalorder %s61, %s64
    %p73 = scmp.eq.s32.totalorder %s14, 1
    %p74 = por %p72, %p73
    %p75 = scmp.ne.s32.totalorder %s64, %s65
    %p76 = scmp.eq.s32.totalorder %s14, 0
    %p77 = por %p75, %p76
    %p78 = scmp.ne.s32.totalorder %s64, %s65
    %p79 = scmp.eq.s32.totalorder %s15, 1
    %p80 = por %p78, %p79
    %p82 = scmp.ne.s32.totalorder %s65, %s81
    %p83 = scmp.eq.s32.totalorder %s15, 0
    %p84 = por %p82, %p83
    %s85 = ssub.s32 %s9, %s16
    %p86 = scmp.eq.s32.totalorder %s85, 0
    %s88 = sadd.s32 %s87, 1
    %s89 = scalar_select %p86, %s87, %s88
    %p92 = pneg %p86
    %p93 = scmp.eq.s32.totalorder %s9, 1
    %p94 = por %p92, %p93
    %p95 = scmp.ne.s32.totalorder %s87, %s90
    %p96 = scmp.eq.s32.totalorder %s9, 0
    %p97 = por %p95, %p96
    %p98 = scmp.ne.s32.totalorder %s87, %s90
    %p99 = scmp.eq.s32.totalorder %s14, 1
    %p100 = por %p98, %p99
    %p101 = scmp.ne.s32.totalorder %s90, %s91
    %p102 = scmp.eq.s32.totalorder %s14, 0
    %p103 = por %p101, %p102
    %p104 = scmp.ne.s32.totalorder %s90, %s91
    %p105 = scmp.eq.s32.totalorder %s15, 1
    %p106 = por %p104, %p105
    %p108 = scmp.ne.s32.totalorder %s91, %s107
    %p109 = scmp.eq.s32.totalorder %s15, 0
    %p110 = por %p108, %p109
    %p111 = scmp.le.s32.totalorder 1, %s9
    %p112 = scmp.lt.s32.totalorder %s9, 3
    %p113 = pnand %p111, %p112
    %p114 = pneg %p113
    // Predicated region
    $region9: #{tpu_custom_call.1} parent=5 // pred_check
      _
    $region10: #{tpu_custom_call.1} parent=5 // pred_check_branch
      %116 = sbr.rel (%p113) target = $region12
    $region11: #{tpu_custom_call.1} parent=5 // pred_region
      %s117 = ssub.s32 %s9, 1
      // Predicated region
      $region13: #{tpu_custom_call.1} parent=11 // pred_check
        %p118 = pneg %p30
      $region14: #{tpu_custom_call.1} parent=11 // pred_check_branch
        %120 = sbr.rel (%p118) target = $region16
      $region15: #{tpu_custom_call.1} parent=11 // pred_region
        _
      $region16: #{tpu_custom_call.1} parent=11 // pred_fallthru
        _
      // Predicated region
      $region17: #{tpu_custom_call.1} parent=11 // pred_check
        %p121 = pneg %p51
      $region18: #{tpu_custom_call.1} parent=11 // pred_check_branch
        %123 = sbr.rel (%p121) target = $region20
      $region19: #{tpu_custom_call.1} parent=11 // pred_region
        _
      $region20: #{tpu_custom_call.1} parent=11 // pred_fallthru
        _
    $region12: #{tpu_custom_call.1} parent=5 // pred_fallthru
      _
    %p124 = scmp.lt.s32.totalorder %s9, 2
    // Predicated region
    $region21: #{tpu_custom_call.1} parent=5 // pred_check
      %p125 = pneg %p124
    $region22: #{tpu_custom_call.1} parent=5 // pred_check_branch
      %127 = sbr.rel (%p125) target = $region24
    $region23: #{tpu_custom_call.1} parent=5 // pred_region
      // Predicated region
      $region25: #{tpu_custom_call.1} parent=23 // pred_check
        %p128 = pneg %p71
      $region26: #{tpu_custom_call.1} parent=23 // pred_check_branch
        %130 = sbr.rel (%p128) target = $region28
      $region27: #{tpu_custom_call.1} parent=23 // pred_region
        %s131 = smul.u32 8, %s9
        %p132 = scmp.lt.s32.totalorder %s131, 15
        %s133 = scalar_select %p132, %s131, 15
        %s134 = smul.addr %s133, 8
        %s135 = scalar_lea.vmem %s2, %s134
        %s136 = smul.u32 8, %s9
      $region28: #{tpu_custom_call.1} parent=23 // pred_fallthru
        _
    $region24: #{tpu_custom_call.1} parent=5 // pred_fallthru
      _
    %p137 = scmp.le.s32.totalorder 1, %s9
    %p138 = scmp.lt.s32.totalorder %s9, 3
    %p139 = pnand %p137, %p138
    %p140 = pneg %p139
    // Predicated region
    $region29: #{tpu_custom_call.1} parent=5 // pred_check
      _
    $region30: #{tpu_custom_call.1} parent=5 // pred_check_branch
      %142 = sbr.rel (%p139) target = $region32
    $region31: #{tpu_custom_call.1} parent=5 // pred_region
      %s143 = ssub.s32 %s9, 1
      %p144 = pneg %p30
      %p145 = pneg %p27
      %p146 = pneg %p51
      %p147 = pneg %p48
      %s148 = smul.u32 8, %s14
      %p149 = scmp.lt.s32.totalorder %s148, 15
      %s150 = scalar_select %p149, %s148, 15
      %s151 = smul.addr %s150, 8
      %s152 = scalar_lea.vmem %s2, %s151
      %p153 = pneg %p77
      %p154 = pneg %p74
      %p155 = pneg %p103
      %p156 = pneg %p100
      %s157 = smul.u32 8, %s14
      %p158 = scmp.lt.s32.totalorder %s157, 15
      %s159 = scalar_select %p158, %s157, 15
      %s160 = smul.addr %s159, 8
      %s161 = scalar_lea.vmem %s3, %s160
      %s162 = smul.u32 8, %s14
      %p163 = scmp.lt.s32.totalorder %s162, 15
      %s164 = scalar_select %p163, %s162, 15
      %s165 = smul.addr %s164, 8
      %s166 = scalar_lea.vmem %s2, %s165
      %s167 = smul.u32 8, %s14
      %s168 = smul.u32 8, %s14
      %p169 = scmp.lt.s32.totalorder %s168, 15
      %s170 = scalar_select %p169, %s168, 15
      %s171 = smul.addr %s170, 8
      %s172 = scalar_lea.vmem %s3, %s171
      %s173 = smul.u32 8, %s14
      %v174 = vld [vmem:[%s166] sm:$0xff]
      %v175 = vld [vmem:[%s166 + $0x8] sm:$0xff]
      %v176 = vld [vmem:[%s166 + $0x10] sm:$0xff]
      %v177 = vld [vmem:[%s166 + $0x18] sm:$0xff]
      %v178 = vld [vmem:[%s166 + $0x20] sm:$0xff]
      %v179 = vld [vmem:[%s166 + $0x28] sm:$0xff]
      %v180 = vld [vmem:[%s166 + $0x30] sm:$0xff]
      %v181 = vld [vmem:[%s166 + $0x38] sm:$0xff]
      %v182 = vlaneseq
      %v183 = vand.u32 %v182, 127
      %vm184 = vcmp.lt.s32.totalorder %v183, 0
      %v185 = vsub.s32 0, %v183
      %v186 = vsel %vm184, %v185, %v183
      %v187 = vand.u32 %v186, 65535
      %v188 = vshrl.u32 %v186, 16
      %v190 = vmul.u32 %v187, 43691
      %v191 = vmul.u32 %v187, 43690
      %v192 = vmul.u32 %v188, 43691
      %v193 = vmul.u32 %v188, 43690
      %v194 = vshll.u32 %v191, 16
      %v195 = vshrl.u32 %v191, 16
      %v196 = vshll.u32 %v192, 16
      %v197 = vshrl.u32 %v192, 16
      %vm198 = vc.u32 %v190, %v194
      %v199 = vsel %vm198, 1, 0
      %v200 = vadd.s32 %v190, %v194
      %v201 = vadd.s32 %v193, %v199
      %vm202 = vc.u32 %v200, %v196
      %v203 = vsel %vm202, 1, 0
      %v204 = vadd.s32 %v200, %v196
      %v205 = vadd.s32 %v201, %v203
      %v206 = vadd.s32 %v205, %v195
      %v207 = vadd.s32 %v206, %v197
      %v208 = vshrl.u32 %v207, 1
      %v209 = vmul.u32 %v208, 3
      %v210 = vsub.s32 %v186, %v209
      %v211 = vsub.s32 0, %v210
      %v212 = vsel %vm184, %v211, %v210
      %vm213 = vcmp.ne.s32.totalorder %v212, 0
      %vm214 = vcmp.lt.s32.totalorder %v212, 0
      %vm215 = vmand %vm214, %vm213
      %v216 = vadd.s32 %v212, 3
      %v217 = vsel %vm215, %v216, %v212
      %219 = vset.pattern.permute.xlu0 0
      %220 = vperm.xlu0 %219, %v174
      %v221 = vpop.permute.xlu0 %220
      %224 = vset.pattern.permute.xlu0 0
      %225 = vperm.xlu0 %224, %v175
      %v226 = vpop.permute.xlu0 %225
      %229 = vset.pattern.permute.xlu0 0
      %230 = vperm.xlu0 %229, %v176
      %v231 = vpop.permute.xlu0 %230
      %234 = vset.pattern.permute.xlu0 0
      %235 = vperm.xlu0 %234, %v177
      %v236 = vpop.permute.xlu0 %235
      %239 = vset.pattern.permute.xlu0 0
      %240 = vperm.xlu0 %239, %v178
      %v241 = vpop.permute.xlu0 %240
      %244 = vset.pattern.permute.xlu0 0
      %245 = vperm.xlu0 %244, %v179
      %v246 = vpop.permute.xlu0 %245
      %249 = vset.pattern.permute.xlu0 0
      %250 = vperm.xlu0 %249, %v180
      %v251 = vpop.permute.xlu0 %250
      %254 = vset.pattern.permute.xlu0 0
      %255 = vperm.xlu0 %254, %v181
      %v256 = vpop.permute.xlu0 %255
      %vm258 = vcmp.eq.s32.totalorder %v217, 1
      %259 = vset.pattern.permute.xlu0 1
      %260 = vperm.xlu0 %259, %v174
      %v261 = vpop.permute.xlu0 %260
      %263 = vset.pattern.permute.xlu0 1
      %264 = vperm.xlu0 %263, %v175
      %v265 = vpop.permute.xlu0 %264
      %267 = vset.pattern.permute.xlu0 1
      %268 = vperm.xlu0 %267, %v176
      %v269 = vpop.permute.xlu0 %268
      %271 = vset.pattern.permute.xlu0 1
      %272 = vperm.xlu0 %271, %v177
      %v273 = vpop.permute.xlu0 %272
      %275 = vset.pattern.permute.xlu0 1
      %276 = vperm.xlu0 %275, %v178
      %v277 = vpop.permute.xlu0 %276
      %279 = vset.pattern.permute.xlu0 1
      %280 = vperm.xlu0 %279, %v179
      %v281 = vpop.permute.xlu0 %280
      %283 = vset.pattern.permute.xlu0 1
      %284 = vperm.xlu0 %283, %v180
      %v285 = vpop.permute.xlu0 %284
      %287 = vset.pattern.permute.xlu0 1
      %288 = vperm.xlu0 %287, %v181
      %v289 = vpop.permute.xlu0 %288
      %v291 = vsel %vm258, %v261, %v221
      %v292 = vsel %vm258, %v265, %v226
      %v293 = vsel %vm258, %v269, %v231
      %v294 = vsel %vm258, %v273, %v236
      %v295 = vsel %vm258, %v277, %v241
      %v296 = vsel %vm258, %v281, %v246
      %v297 = vsel %vm258, %v285, %v251
      %v298 = vsel %vm258, %v289, %v256
      %vm299 = vcmp.eq.s32.totalorder %v217, 2
      %300 = vset.pattern.permute.xlu0 2
      %301 = vperm.xlu0 %300, %v174
      %v302 = vpop.permute.xlu0 %301
      %304 = vset.pattern.permute.xlu0 2
      %305 = vperm.xlu0 %304, %v175
      %v306 = vpop.permute.xlu0 %305
      %308 = vset.pattern.permute.xlu0 2
      %309 = vperm.xlu0 %308, %v176
      %v310 = vpop.permute.xlu0 %309
      %312 = vset.pattern.permute.xlu0 2
      %313 = vperm.xlu0 %312, %v177
      %v314 = vpop.permute.xlu0 %313
      %316 = vset.pattern.permute.xlu0 2
      %317 = vperm.xlu0 %316, %v178
      %v318 = vpop.permute.xlu0 %317
      %320 = vset.pattern.permute.xlu0 2
      %321 = vperm.xlu0 %320, %v179
      %v322 = vpop.permute.xlu0 %321
      %324 = vset.pattern.permute.xlu0 2
      %325 = vperm.xlu0 %324, %v180
      %v326 = vpop.permute.xlu0 %325
      %328 = vset.pattern.permute.xlu0 2
      %329 = vperm.xlu0 %328, %v181
      %v330 = vpop.permute.xlu0 %329
      %v332 = vsel %vm299, %v302, %v291
      %v333 = vsel %vm299, %v306, %v292
      %v334 = vsel %vm299, %v310, %v293
      %v335 = vsel %vm299, %v314, %v294
      %v336 = vsel %vm299, %v318, %v295
      %v337 = vsel %vm299, %v322, %v296
      %v338 = vsel %vm299, %v326, %v297
      %v339 = vsel %vm299, %v330, %v298
      %v340 = vld [vmem:[%s0] sm:$0x1]
      %v341 = vld [vmem:[%s1] sm:$0x1]
      %v343 = vperm.slane %v340, 0
      %v345 = vmul.f32 %v332, %v343
      %v346 = vmul.f32 %v333, %v343
      %v347 = vmul.f32 %v334, %v343
      %v348 = vmul.f32 %v335, %v343
      %v349 = vmul.f32 %v336, %v343
      %v350 = vmul.f32 %v337, %v343
      %v351 = vmul.f32 %v338, %v343
      %v352 = vmul.f32 %v339, %v343
      %v354 = vperm.slane %v341, 0
      %v356 = vadd.f32 %v345, %v354
      %v357 = vadd.f32 %v346, %v354
      %v358 = vadd.f32 %v347, %v354
      %v359 = vadd.f32 %v348, %v354
      %v360 = vadd.f32 %v349, %v354
      %v361 = vadd.f32 %v350, %v354
      %v362 = vadd.f32 %v351, %v354
      %v363 = vadd.f32 %v352, %v354
      %v364 = vand.u32 2147483647, %v356
      %vm365 = vcmp.le.f32.partialorder %v364, 0.7853982
      %vm366 = vcmp.lt.s32.totalorder %v356, 0
      %v367 = vand.u32 %v356, 2139095040
      %v368 = vshrl.u32 %v367, 23
      %v369 = vsub.s32 %v368, 127
      %v370 = vand.u32 2147483647, %v356
      %v371 = vand.u32 %v370, 8388607
      %v372 = vor.u32 %v371, 8388608
      %v373 = vsub.s32 0, %v372
      %v374 = vadd.s32 %v369, 1
      %vm375 = vcmp.gt.s32.totalorder %v374, 0
      %v376 = vsel %vm375, %v374, 0
      %v377 = vshrl.u32 %v376, 5
      %v378 = vand.u32 %v376, 31
      %v379 = vsub.s32 32, %v378
      %v380 = vshrl.u32 683565275, %v379
      %v381 = vshll.u32 683565275, %v378
      %v382 = vshrl.u32 2475754826, %v379
      %v383 = vor.u32 %v381, %v382
      %v384 = vshll.u32 2475754826, %v378
      %v385 = vshrl.u32 2131351028, %v379
      %v386 = vor.u32 %v384, %v385
      %v387 = vshll.u32 2131351028, %v378
      %v388 = vshrl.u32 2102212464, %v379
      %v389 = vor.u32 %v387, %v388
      %v390 = vshll.u32 2102212464, %v378
      %v391 = vshrl.u32 920167782, %v379
      %v392 = vor.u32 %v390, %v391
      %v393 = vshll.u32 920167782, %v378
      %v394 = vshrl.u32 1326507024, %v379
      %v395 = vor.u32 %v393, %v394
      %vm396 = vcmp.lt.s32.totalorder %v377, 1
      %vm397 = vcmp.lt.s32.totalorder %v377, 2
      %vm398 = vcmp.lt.s32.totalorder %v377, 3
      %vm399 = vcmp.lt.s32.totalorder %v377, 4
      %v400 = vsel %vm396, %v380, %v383
      %v401 = vsel %vm399, %v389, 2102212464
      %v402 = vsel %vm398, %v386, %v401
      %v403 = vsel %vm397, %v400, %v402
      %v404 = vsel %vm396, %v383, %v386
      %v405 = vsel %vm399, %v392, 920167782
      %v406 = vsel %vm398, %v389, %v405
      %v407 = vsel %vm397, %v404, %v406
      %v408 = vsel %vm396, %v386, %v389
      %v409 = vsel %vm399, %v395, 1326507024
      %v410 = vsel %vm398, %v392, %v409
      %v411 = vsel %vm397, %v408, %v410
      %v412 = vshll.u32 %v372, 8
      %v413 = vand.u32 %v412, 65535
      %v414 = vshrl.u32 %v412, 16
      %v415 = vand.u32 %v411, 65535
      %v416 = vshrl.u32 %v411, 16
      %v417 = vmul.u32 %v413, %v415
      %v418 = vmul.u32 %v413, %v416
      %v419 = vmul.u32 %v414, %v415
      %v420 = vmul.u32 %v414, %v416
      %v421 = vshll.u32 %v418, 16
      %v422 = vshrl.u32 %v418, 16
      %v423 = vshll.u32 %v419, 16
      %v424 = vshrl.u32 %v419, 16
      %vm425 = vc.u32 %v417, %v421
      %v426 = vsel %vm425, 1, 0
      %v427 = vadd.s32 %v417, %v421
      %v428 = vadd.s32 %v420, %v426
      %vm429 = vc.u32 %v427, %v423
      %v430 = vsel %vm429, 1, 0
      %v431 = vadd.s32 %v427, %v423
      %v432 = vadd.s32 %v428, %v430
      %v433 = vadd.s32 %v432, %v422
      %v434 = vadd.s32 %v433, %v424
      %v435 = vand.u32 %v412, 65535
      %v436 = vshrl.u32 %v412, 16
      %v437 = vand.u32 %v407, 65535
      %v438 = vshrl.u32 %v407, 16
      %v439 = vmul.u32 %v435, %v437
      %v440 = vmul.u32 %v435, %v438
      %v441 = vmul.u32 %v436, %v437
      %v442 = vmul.u32 %v436, %v438
      %v443 = vshll.u32 %v440, 16
      %v444 = vshrl.u32 %v440, 16
      %v445 = vshll.u32 %v441, 16
      %v446 = vshrl.u32 %v441, 16
      %vm447 = vc.u32 %v439, %v443
      %v448 = vsel %vm447, 1, 0
      %v449 = vadd.s32 %v439, %v443
      %v450 = vadd.s32 %v442, %v448
      %vm451 = vc.u32 %v449, %v445
      %v452 = vsel %vm451, 1, 0
      %v453 = vadd.s32 %v449, %v445
      %v454 = vadd.s32 %v450, %v452
      %v455 = vadd.s32 %v454, %v444
      %v456 = vadd.s32 %v455, %v446
      %v457 = vmul.u32 %v412, %v403
      %v458 = vadd.s32 %v434, %v453
      %vm459 = vc.u32 %v434, %v453
      %v460 = vadd.s32 %v456, 1
      %v461 = vsel %vm459, %v460, %v456
      %v462 = vadd.s32 %v457, %v461
      %v463 = vadd.s32 %v462, 536870912
      %v464 = vshrl.u32 %v463, 30
      %v465 = vshll.u32 %v464, 30
      %v466 = vsub.s32 %v462, %v465
      %vm467 = vcmp.lt.s32.totalorder %v466, 0
      %v468 = vsub.s32 0, %v466
      %v469 = vsel %vm467, %v468, %v466
      %v470 = vclz %v469
      %v471 = vsub.s32 %v470, 2
      %vm472 = vcmp.gt.s32.totalorder 0, %v471
      %v473 = vsel %vm472, 0, %v471
      %v474 = vsub.s32 32, %v473
      %v475 = vshll.u32 %v466, %v473
      %v476 = vshrl.u32 %v458, %v474
      %v477 = vor.u32 %v475, %v476
      %v478 = vsub.s32 4294967266, %v473
      %v479 = vadd.s32 %v478, 127
      %v480 = vshll.u32 %v479, 23
      %v481 = vor.u32 4788187, %v480
      %v482 = vand.u32 2147483647, %v481
      %v484 = vcvt.s32.f32 %v477
      %v485 = vmul.f32 %v484, %v482
      %v486 = vxor.u32 %v485, 2147483648
      %v487 = vsel %vm366, %v486, %v485
      %v488 = vsub.s32 4, %v464
      %v489 = vsel %vm366, %v488, %v464
      %v490 = vsel %vm365, %v356, %v487
      %v491 = vsel %vm365, 0, %v489
      %v492 = vmul.f32 %v490, %v490
      %v493 = vmul.f32 %v492, -0.001358992
      %v494 = vadd.f32 %v493, 0.041655596
      %v495 = vmul.f32 %v492, %v494
      %v496 = vadd.f32 %v495, -0.4999988
      %v497 = vmul.f32 %v492, %v496
      %v498 = vadd.f32 1.0, %v497
      %v499 = vmul.f32 %v490, %v490
      %v500 = vmul.f32 %v499, -0.00019511016
      %v501 = vadd.f32 %v500, 0.008332121
      %v502 = vmul.f32 %v499, %v501
      %v503 = vadd.f32 %v502, -0.16666654
      %v504 = vmul.f32 %v499, %v503
      %v505 = vadd.f32 %v504, 1.0
      %v506 = vmul.f32 %v505, %v490
      %vm507 = vweird.f32 %v356
      %v508 = vadd.s32 %v491, 3
      %v509 = vand.u32 %v508, 3
      %vm510 = vcmp.lt.s32.totalorder %v509, 2
      %vm511 = vcmp.eq.s32.totalorder %v509, 0
      %v512 = vxor.u32 %v506, 2147483648
      %v513 = vsel %vm511, %v498, %v512
      %vm514 = vcmp.eq.s32.totalorder %v509, 2
      %v515 = vxor.u32 %v498, 2147483648
      %v516 = vsel %vm514, %v515, %v506
      %v517 = vsel %vm510, %v513, %v516
      %v518 = vsel %vm507, nan, %v517
      %v519 = vand.u32 2147483647, %v357
      %vm520 = vcmp.le.f32.partialorder %v519, 0.7853982
      %vm521 = vcmp.lt.s32.totalorder %v357, 0
      %v522 = vand.u32 %v357, 2139095040
      %v523 = vshrl.u32 %v522, 23
      %v524 = vsub.s32 %v523, 127
      %v525 = vand.u32 2147483647, %v357
      %v526 = vand.u32 %v525, 8388607
      %v527 = vor.u32 %v526, 8388608
      %v528 = vsub.s32 0, %v527
      %v529 = vadd.s32 %v524, 1
      %vm530 = vcmp.gt.s32.totalorder %v529, 0
      %v531 = vsel %vm530, %v529, 0
      %v532 = vshrl.u32 %v531, 5
      %v533 = vand.u32 %v531, 31
      %v534 = vsub.s32 32, %v533
      %v535 = vshrl.u32 683565275, %v534
      %v536 = vshll.u32 683565275, %v533
      %v537 = vshrl.u32 2475754826, %v534
      %v538 = vor.u32 %v536, %v537
      %v539 = vshll.u32 2475754826, %v533
      %v540 = vshrl.u32 2131351028, %v534
      %v541 = vor.u32 %v539, %v540
      %v542 = vshll.u32 2131351028, %v533
      %v543 = vshrl.u32 2102212464, %v534
      %v544 = vor.u32 %v542, %v543
      %v545 = vshll.u32 2102212464, %v533
      %v546 = vshrl.u32 920167782, %v534
      %v547 = vor.u32 %v545, %v546
      %v548 = vshll.u32 920167782, %v533
      %v549 = vshrl.u32 1326507024, %v534
      %v550 = vor.u32 %v548, %v549
      %vm551 = vcmp.lt.s32.totalorder %v532, 1
      %vm552 = vcmp.lt.s32.totalorder %v532, 2
      %vm553 = vcmp.lt.s32.totalorder %v532, 3
      %vm554 = vcmp.lt.s32.totalorder %v532, 4
      %v555 = vsel %vm551, %v535, %v538
      %v556 = vsel %vm554, %v544, 2102212464
      %v557 = vsel %vm553, %v541, %v556
      %v558 = vsel %vm552, %v555, %v557
      %v559 = vsel %vm551, %v538, %v541
      %v560 = vsel %vm554, %v547, 920167782
      %v561 = vsel %vm553, %v544, %v560
      %v562 = vsel %vm552, %v559, %v561
      %v563 = vsel %vm551, %v541, %v544
      %v564 = vsel %vm554, %v550, 1326507024
      %v565 = vsel %vm553, %v547, %v564
      %v566 = vsel %vm552, %v563, %v565
      %v567 = vshll.u32 %v527, 8
      %v568 = vand.u32 %v567, 65535
      %v569 = vshrl.u32 %v567, 16
      %v570 = vand.u32 %v566, 65535
      %v571 = vshrl.u32 %v566, 16
      %v572 = vmul.u32 %v568, %v570
      %v573 = vmul.u32 %v568, %v571
      %v574 = vmul.u32 %v569, %v570
      %v575 = vmul.u32 %v569, %v571
      %v576 = vshll.u32 %v573, 16
      %v577 = vshrl.u32 %v573, 16
      %v578 = vshll.u32 %v574, 16
      %v579 = vshrl.u32 %v574, 16
      %vm580 = vc.u32 %v572, %v576
      %v581 = vsel %vm580, 1, 0
      %v582 = vadd.s32 %v572, %v576
      %v583 = vadd.s32 %v575, %v581
      %vm584 = vc.u32 %v582, %v578
      %v585 = vsel %vm584, 1, 0
      %v586 = vadd.s32 %v582, %v578
      %v587 = vadd.s32 %v583, %v585
      %v588 = vadd.s32 %v587, %v577
      %v589 = vadd.s32 %v588, %v579
      %v590 = vand.u32 %v567, 65535
      %v591 = vshrl.u32 %v567, 16
      %v592 = vand.u32 %v562, 65535
      %v593 = vshrl.u32 %v562, 16
      %v594 = vmul.u32 %v590, %v592
      %v595 = vmul.u32 %v590, %v593
      %v596 = vmul.u32 %v591, %v592
      %v597 = vmul.u32 %v591, %v593
      %v598 = vshll.u32 %v595, 16
      %v599 = vshrl.u32 %v595, 16
      %v600 = vshll.u32 %v596, 16
      %v601 = vshrl.u32 %v596, 16
      %vm602 = vc.u32 %v594, %v598
      %v603 = vsel %vm602, 1, 0
      %v604 = vadd.s32 %v594, %v598
      %v605 = vadd.s32 %v597, %v603
      %vm606 = vc.u32 %v604, %v600
      %v607 = vsel %vm606, 1, 0
      %v608 = vadd.s32 %v604, %v600
      %v609 = vadd.s32 %v605, %v607
      %v610 = vadd.s32 %v609, %v599
      %v611 = vadd.s32 %v610, %v601
      %v612 = vmul.u32 %v567, %v558
      %v613 = vadd.s32 %v589, %v608
      %vm614 = vc.u32 %v589, %v608
      %v615 = vadd.s32 %v611, 1
      %v616 = vsel %vm614, %v615, %v611
      %v617 = vadd.s32 %v612, %v616
      %v618 = vadd.s32 %v617, 536870912
      %v619 = vshrl.u32 %v618, 30
      %v620 = vshll.u32 %v619, 30
      %v621 = vsub.s32 %v617, %v620
      %vm622 = vcmp.lt.s32.totalorder %v621, 0
      %v623 = vsub.s32 0, %v621
      %v624 = vsel %vm622, %v623, %v621
      %v625 = vclz %v624
      %v626 = vsub.s32 %v625, 2
      %vm627 = vcmp.gt.s32.totalorder 0, %v626
      %v628 = vsel %vm627, 0, %v626
      %v629 = vsub.s32 32, %v628
      %v630 = vshll.u32 %v621, %v628
      %v631 = vshrl.u32 %v613, %v629
      %v632 = vor.u32 %v630, %v631
      %v633 = vsub.s32 4294967266, %v628
      %v634 = vadd.s32 %v633, 127
      %v635 = vshll.u32 %v634, 23
      %v636 = vor.u32 4788187, %v635
      %v637 = vand.u32 2147483647, %v636
      %v639 = vcvt.s32.f32 %v632
      %v640 = vmul.f32 %v639, %v637
      %v641 = vxor.u32 %v640, 2147483648
      %v642 = vsel %vm521, %v641, %v640
      %v643 = vsub.s32 4, %v619
      %v644 = vsel %vm521, %v643, %v619
      %v645 = vsel %vm520, %v357, %v642
      %v646 = vsel %vm520, 0, %v644
      %v647 = vmul.f32 %v645, %v645
      %v648 = vmul.f32 %v647, -0.001358992
      %v649 = vadd.f32 %v648, 0.041655596
      %v650 = vmul.f32 %v647, %v649
      %v651 = vadd.f32 %v650, -0.4999988
      %v652 = vmul.f32 %v647, %v651
      %v653 = vadd.f32 1.0, %v652
      %v654 = vmul.f32 %v645, %v645
      %v655 = vmul.f32 %v654, -0.00019511016
      %v656 = vadd.f32 %v655, 0.008332121
      %v657 = vmul.f32 %v654, %v656
      %v658 = vadd.f32 %v657, -0.16666654
      %v659 = vmul.f32 %v654, %v658
      %v660 = vadd.f32 %v659, 1.0
      %v661 = vmul.f32 %v660, %v645
      %vm662 = vweird.f32 %v357
      %v663 = vadd.s32 %v646, 3
      %v664 = vand.u32 %v663, 3
      %vm665 = vcmp.lt.s32.totalorder %v664, 2
      %vm666 = vcmp.eq.s32.totalorder %v664, 0
      %v667 = vxor.u32 %v661, 2147483648
      %v668 = vsel %vm666, %v653, %v667
      %vm669 = vcmp.eq.s32.totalorder %v664, 2
      %v670 = vxor.u32 %v653, 2147483648
      %v671 = vsel %vm669, %v670, %v661
      %v672 = vsel %vm665, %v668, %v671
      %v673 = vsel %vm662, nan, %v672
      %v674 = vand.u32 2147483647, %v358
      %vm675 = vcmp.le.f32.partialorder %v674, 0.7853982
      %vm676 = vcmp.lt.s32.totalorder %v358, 0
      %v677 = vand.u32 %v358, 2139095040
      %v678 = vshrl.u32 %v677, 23
      %v679 = vsub.s32 %v678, 127
      %v680 = vand.u32 2147483647, %v358
      %v681 = vand.u32 %v680, 8388607
      %v682 = vor.u32 %v681, 8388608
      %v683 = vsub.s32 0, %v682
      %v684 = vadd.s32 %v679, 1
      %vm685 = vcmp.gt.s32.totalorder %v684, 0
      %v686 = vsel %vm685, %v684, 0
      %v687 = vshrl.u32 %v686, 5
      %v688 = vand.u32 %v686, 31
      %v689 = vsub.s32 32, %v688
      %v690 = vshrl.u32 683565275, %v689
      %v691 = vshll.u32 683565275, %v688
      %v692 = vshrl.u32 2475754826, %v689
      %v693 = vor.u32 %v691, %v692
      %v694 = vshll.u32 2475754826, %v688
      %v695 = vshrl.u32 2131351028, %v689
      %v696 = vor.u32 %v694, %v695
      %v697 = vshll.u32 2131351028, %v688
      %v698 = vshrl.u32 2102212464, %v689
      %v699 = vor.u32 %v697, %v698
      %v700 = vshll.u32 2102212464, %v688
      %v701 = vshrl.u32 920167782, %v689
      %v702 = vor.u32 %v700, %v701
      %v703 = vshll.u32 920167782, %v688
      %v704 = vshrl.u32 1326507024, %v689
      %v705 = vor.u32 %v703, %v704
      %vm706 = vcmp.lt.s32.totalorder %v687, 1
      %vm707 = vcmp.lt.s32.totalorder %v687, 2
      %vm708 = vcmp.lt.s32.totalorder %v687, 3
      %vm709 = vcmp.lt.s32.totalorder %v687, 4
      %v710 = vsel %vm706, %v690, %v693
      %v711 = vsel %vm709, %v699, 2102212464
      %v712 = vsel %vm708, %v696, %v711
      %v713 = vsel %vm707, %v710, %v712
      %v714 = vsel %vm706, %v693, %v696
      %v715 = vsel %vm709, %v702, 920167782
      %v716 = vsel %vm708, %v699, %v715
      %v717 = vsel %vm707, %v714, %v716
      %v718 = vsel %vm706, %v696, %v699
      %v719 = vsel %vm709, %v705, 1326507024
      %v720 = vsel %vm708, %v702, %v719
      %v721 = vsel %vm707, %v718, %v720
      %v722 = vshll.u32 %v682, 8
      %v723 = vand.u32 %v722, 65535
      %v724 = vshrl.u32 %v722, 16
      %v725 = vand.u32 %v721, 65535
      %v726 = vshrl.u32 %v721, 16
      %v727 = vmul.u32 %v723, %v725
      %v728 = vmul.u32 %v723, %v726
      %v729 = vmul.u32 %v724, %v725
      %v730 = vmul.u32 %v724, %v726
      %v731 = vshll.u32 %v728, 16
      %v732 = vshrl.u32 %v728, 16
      %v733 = vshll.u32 %v729, 16
      %v734 = vshrl.u32 %v729, 16
      %vm735 = vc.u32 %v727, %v731
      %v736 = vsel %vm735, 1, 0
      %v737 = vadd.s32 %v727, %v731
      %v738 = vadd.s32 %v730, %v736
      %vm739 = vc.u32 %v737, %v733
      %v740 = vsel %vm739, 1, 0
      %v741 = vadd.s32 %v737, %v733
      %v742 = vadd.s32 %v738, %v740
      %v743 = vadd.s32 %v742, %v732
      %v744 = vadd.s32 %v743, %v734
      %v745 = vand.u32 %v722, 65535
      %v746 = vshrl.u32 %v722, 16
      %v747 = vand.u32 %v717, 65535
      %v748 = vshrl.u32 %v717, 16
      %v749 = vmul.u32 %v745, %v747
      %v750 = vmul.u32 %v745, %v748
      %v751 = vmul.u32 %v746, %v747
      %v752 = vmul.u32 %v746, %v748
      %v753 = vshll.u32 %v750, 16
      %v754 = vshrl.u32 %v750, 16
      %v755 = vshll.u32 %v751, 16
      %v756 = vshrl.u32 %v751, 16
      %vm757 = vc.u32 %v749, %v753
      %v758 = vsel %vm757, 1, 0
      %v759 = vadd.s32 %v749, %v753
      %v760 = vadd.s32 %v752, %v758
      %vm761 = vc.u32 %v759, %v755
      %v762 = vsel %vm761, 1, 0
      %v763 = vadd.s32 %v759, %v755
      %v764 = vadd.s32 %v760, %v762
      %v765 = vadd.s32 %v764, %v754
      %v766 = vadd.s32 %v765, %v756
      %v767 = vmul.u32 %v722, %v713
      %v768 = vadd.s32 %v744, %v763
      %vm769 = vc.u32 %v744, %v763
      %v770 = vadd.s32 %v766, 1
      %v771 = vsel %vm769, %v770, %v766
      %v772 = vadd.s32 %v767, %v771
      %v773 = vadd.s32 %v772, 536870912
      %v774 = vshrl.u32 %v773, 30
      %v775 = vshll.u32 %v774, 30
      %v776 = vsub.s32 %v772, %v775
      %vm777 = vcmp.lt.s32.totalorder %v776, 0
      %v778 = vsub.s32 0, %v776
      %v779 = vsel %vm777, %v778, %v776
      %v780 = vclz %v779
      %v781 = vsub.s32 %v780, 2
      %vm782 = vcmp.gt.s32.totalorder 0, %v781
      %v783 = vsel %vm782, 0, %v781
      %v784 = vsub.s32 32, %v783
      %v785 = vshll.u32 %v776, %v783
      %v786 = vshrl.u32 %v768, %v784
      %v787 = vor.u32 %v785, %v786
      %v788 = vsub.s32 4294967266, %v783
      %v789 = vadd.s32 %v788, 127
      %v790 = vshll.u32 %v789, 23
      %v791 = vor.u32 4788187, %v790
      %v792 = vand.u32 2147483647, %v791
      %v794 = vcvt.s32.f32 %v787
      %v795 = vmul.f32 %v794, %v792
      %v796 = vxor.u32 %v795, 2147483648
      %v797 = vsel %vm676, %v796, %v795
      %v798 = vsub.s32 4, %v774
      %v799 = vsel %vm676, %v798, %v774
      %v800 = vsel %vm675, %v358, %v797
      %v801 = vsel %vm675, 0, %v799
      %v802 = vmul.f32 %v800, %v800
      %v803 = vmul.f32 %v802, -0.001358992
      %v804 = vadd.f32 %v803, 0.041655596
      %v805 = vmul.f32 %v802, %v804
      %v806 = vadd.f32 %v805, -0.4999988
      %v807 = vmul.f32 %v802, %v806
      %v808 = vadd.f32 1.0, %v807
      %v809 = vmul.f32 %v800, %v800
      %v810 = vmul.f32 %v809, -0.00019511016
      %v811 = vadd.f32 %v810, 0.008332121
      %v812 = vmul.f32 %v809, %v811
      %v813 = vadd.f32 %v812, -0.16666654
      %v814 = vmul.f32 %v809, %v813
      %v815 = vadd.f32 %v814, 1.0
      %v816 = vmul.f32 %v815, %v800
      %vm817 = vweird.f32 %v358
      %v818 = vadd.s32 %v801, 3
      %v819 = vand.u32 %v818, 3
      %vm820 = vcmp.lt.s32.totalorder %v819, 2
      %vm821 = vcmp.eq.s32.totalorder %v819, 0
      %v822 = vxor.u32 %v816, 2147483648
      %v823 = vsel %vm821, %v808, %v822
      %vm824 = vcmp.eq.s32.totalorder %v819, 2
      %v825 = vxor.u32 %v808, 2147483648
      %v826 = vsel %vm824, %v825, %v816
      %v827 = vsel %vm820, %v823, %v826
      %v828 = vsel %vm817, nan, %v827
      %v829 = vand.u32 2147483647, %v359
      %vm830 = vcmp.le.f32.partialorder %v829, 0.7853982
      %vm831 = vcmp.lt.s32.totalorder %v359, 0
      %v832 = vand.u32 %v359, 2139095040
      %v833 = vshrl.u32 %v832, 23
      %v834 = vsub.s32 %v833, 127
      %v835 = vand.u32 2147483647, %v359
      %v836 = vand.u32 %v835, 8388607
      %v837 = vor.u32 %v836, 8388608
      %v838 = vsub.s32 0, %v837
      %v839 = vadd.s32 %v834, 1
      %vm840 = vcmp.gt.s32.totalorder %v839, 0
      %v841 = vsel %vm840, %v839, 0
      %v842 = vshrl.u32 %v841, 5
      %v843 = vand.u32 %v841, 31
      %v844 = vsub.s32 32, %v843
      %v845 = vshrl.u32 683565275, %v844
      %v846 = vshll.u32 683565275, %v843
      %v847 = vshrl.u32 2475754826, %v844
      %v848 = vor.u32 %v846, %v847
      %v849 = vshll.u32 2475754826, %v843
      %v850 = vshrl.u32 2131351028, %v844
      %v851 = vor.u32 %v849, %v850
      %v852 = vshll.u32 2131351028, %v843
      %v853 = vshrl.u32 2102212464, %v844
      %v854 = vor.u32 %v852, %v853
      %v855 = vshll.u32 2102212464, %v843
      %v856 = vshrl.u32 920167782, %v844
      %v857 = vor.u32 %v855, %v856
      %v858 = vshll.u32 920167782, %v843
      %v859 = vshrl.u32 1326507024, %v844
      %v860 = vor.u32 %v858, %v859
      %vm861 = vcmp.lt.s32.totalorder %v842, 1
      %vm862 = vcmp.lt.s32.totalorder %v842, 2
      %vm863 = vcmp.lt.s32.totalorder %v842, 3
      %vm864 = vcmp.lt.s32.totalorder %v842, 4
      %v865 = vsel %vm861, %v845, %v848
      %v866 = vsel %vm864, %v854, 2102212464
      %v867 = vsel %vm863, %v851, %v866
      %v868 = vsel %vm862, %v865, %v867
      %v869 = vsel %vm861, %v848, %v851
      %v870 = vsel %vm864, %v857, 920167782
      %v871 = vsel %vm863, %v854, %v870
      %v872 = vsel %vm862, %v869, %v871
      %v873 = vsel %vm861, %v851, %v854
      %v874 = vsel %vm864, %v860, 1326507024
      %v875 = vsel %vm863, %v857, %v874
      %v876 = vsel %vm862, %v873, %v875
      %v877 = vshll.u32 %v837, 8
      %v878 = vand.u32 %v877, 65535
      %v879 = vshrl.u32 %v877, 16
      %v880 = vand.u32 %v876, 65535
      %v881 = vshrl.u32 %v876, 16
      %v882 = vmul.u32 %v878, %v880
      %v883 = vmul.u32 %v878, %v881
      %v884 = vmul.u32 %v879, %v880
      %v885 = vmul.u32 %v879, %v881
      %v886 = vshll.u32 %v883, 16
      %v887 = vshrl.u32 %v883, 16
      %v888 = vshll.u32 %v884, 16
      %v889 = vshrl.u32 %v884, 16
      %vm890 = vc.u32 %v882, %v886
      %v891 = vsel %vm890, 1, 0
      %v892 = vadd.s32 %v882, %v886
      %v893 = vadd.s32 %v885, %v891
      %vm894 = vc.u32 %v892, %v888
      %v895 = vsel %vm894, 1, 0
      %v896 = vadd.s32 %v892, %v888
      %v897 = vadd.s32 %v893, %v895
      %v898 = vadd.s32 %v897, %v887
      %v899 = vadd.s32 %v898, %v889
      %v900 = vand.u32 %v877, 65535
      %v901 = vshrl.u32 %v877, 16
      %v902 = vand.u32 %v872, 65535
      %v903 = vshrl.u32 %v872, 16
      %v904 = vmul.u32 %v900, %v902
      %v905 = vmul.u32 %v900, %v903
      %v906 = vmul.u32 %v901, %v902
      %v907 = vmul.u32 %v901, %v903
      %v908 = vshll.u32 %v905, 16
      %v909 = vshrl.u32 %v905, 16
      %v910 = vshll.u32 %v906, 16
      %v911 = vshrl.u32 %v906, 16
      %vm912 = vc.u32 %v904, %v908
      %v913 = vsel %vm912, 1, 0
      %v914 = vadd.s32 %v904, %v908
      %v915 = vadd.s32 %v907, %v913
      %vm916 = vc.u32 %v914, %v910
      %v917 = vsel %vm916, 1, 0
      %v918 = vadd.s32 %v914, %v910
      %v919 = vadd.s32 %v915, %v917
      %v920 = vadd.s32 %v919, %v909
      %v921 = vadd.s32 %v920, %v911
      %v922 = vmul.u32 %v877, %v868
      %v923 = vadd.s32 %v899, %v918
      %vm924 = vc.u32 %v899, %v918
      %v925 = vadd.s32 %v921, 1
      %v926 = vsel %vm924, %v925, %v921
      %v927 = vadd.s32 %v922, %v926
      %v928 = vadd.s32 %v927, 536870912
      %v929 = vshrl.u32 %v928, 30
      %v930 = vshll.u32 %v929, 30
      %v931 = vsub.s32 %v927, %v930
      %vm932 = vcmp.lt.s32.totalorder %v931, 0
      %v933 = vsub.s32 0, %v931
      %v934 = vsel %vm932, %v933, %v931
      %v935 = vclz %v934
      %v936 = vsub.s32 %v935, 2
      %vm937 = vcmp.gt.s32.totalorder 0, %v936
      %v938 = vsel %vm937, 0, %v936
      %v939 = vsub.s32 32, %v938
      %v940 = vshll.u32 %v931, %v938
      %v941 = vshrl.u32 %v923, %v939
      %v942 = vor.u32 %v940, %v941
      %v943 = vsub.s32 4294967266, %v938
      %v944 = vadd.s32 %v943, 127
      %v945 = vshll.u32 %v944, 23
      %v946 = vor.u32 4788187, %v945
      %v947 = vand.u32 2147483647, %v946
      %v949 = vcvt.s32.f32 %v942
      %v950 = vmul.f32 %v949, %v947
      %v951 = vxor.u32 %v950, 2147483648
      %v952 = vsel %vm831, %v951, %v950
      %v953 = vsub.s32 4, %v929
      %v954 = vsel %vm831, %v953, %v929
      %v955 = vsel %vm830, %v359, %v952
      %v956 = vsel %vm830, 0, %v954
      %v957 = vmul.f32 %v955, %v955
      %v958 = vmul.f32 %v957, -0.001358992
      %v959 = vadd.f32 %v958, 0.041655596
      %v960 = vmul.f32 %v957, %v959
      %v961 = vadd.f32 %v960, -0.4999988
      %v962 = vmul.f32 %v957, %v961
      %v963 = vadd.f32 1.0, %v962
      %v964 = vmul.f32 %v955, %v955
      %v965 = vmul.f32 %v964, -0.00019511016
      %v966 = vadd.f32 %v965, 0.008332121
      %v967 = vmul.f32 %v964, %v966
      %v968 = vadd.f32 %v967, -0.16666654
      %v969 = vmul.f32 %v964, %v968
      %v970 = vadd.f32 %v969, 1.0
      %v971 = vmul.f32 %v970, %v955
      %vm972 = vweird.f32 %v359
      %v973 = vadd.s32 %v956, 3
      %v974 = vand.u32 %v973, 3
      %vm975 = vcmp.lt.s32.totalorder %v974, 2
      %vm976 = vcmp.eq.s32.totalorder %v974, 0
      %v977 = vxor.u32 %v971, 2147483648
      %v978 = vsel %vm976, %v963, %v977
      %vm979 = vcmp.eq.s32.totalorder %v974, 2
      %v980 = vxor.u32 %v963, 2147483648
      %v981 = vsel %vm979, %v980, %v971
      %v982 = vsel %vm975, %v978, %v981
      %v983 = vsel %vm972, nan, %v982
      %v984 = vand.u32 2147483647, %v360
      %vm985 = vcmp.le.f32.partialorder %v984, 0.7853982
      %vm986 = vcmp.lt.s32.totalorder %v360, 0
      %v987 = vand.u32 %v360, 2139095040
      %v988 = vshrl.u32 %v987, 23
      %v989 = vsub.s32 %v988, 127
      %v990 = vand.u32 2147483647, %v360
      %v991 = vand.u32 %v990, 8388607
      %v992 = vor.u32 %v991, 8388608
      %v993 = vsub.s32 0, %v992
      %v994 = vadd.s32 %v989, 1
      %vm995 = vcmp.gt.s32.totalorder %v994, 0
      %v996 = vsel %vm995, %v994, 0
      %v997 = vshrl.u32 %v996, 5
      %v998 = vand.u32 %v996, 31
      %v999 = vsub.s32 32, %v998
      %v1000 = vshrl.u32 683565275, %v999
      %v1001 = vshll.u32 683565275, %v998
      %v1002 = vshrl.u32 2475754826, %v999
      %v1003 = vor.u32 %v1001, %v1002
      %v1004 = vshll.u32 2475754826, %v998
      %v1005 = vshrl.u32 2131351028, %v999
      %v1006 = vor.u32 %v1004, %v1005
      %v1007 = vshll.u32 2131351028, %v998
      %v1008 = vshrl.u32 2102212464, %v999
      %v1009 = vor.u32 %v1007, %v1008
      %v1010 = vshll.u32 2102212464, %v998
      %v1011 = vshrl.u32 920167782, %v999
      %v1012 = vor.u32 %v1010, %v1011
      %v1013 = vshll.u32 920167782, %v998
      %v1014 = vshrl.u32 1326507024, %v999
      %v1015 = vor.u32 %v1013, %v1014
      %vm1016 = vcmp.lt.s32.totalorder %v997, 1
      %vm1017 = vcmp.lt.s32.totalorder %v997, 2
      %vm1018 = vcmp.lt.s32.totalorder %v997, 3
      %vm1019 = vcmp.lt.s32.totalorder %v997, 4
      %v1020 = vsel %vm1016, %v1000, %v1003
      %v1021 = vsel %vm1019, %v1009, 2102212464
      %v1022 = vsel %vm1018, %v1006, %v1021
      %v1023 = vsel %vm1017, %v1020, %v1022
      %v1024 = vsel %vm1016, %v1003, %v1006
      %v1025 = vsel %vm1019, %v1012, 920167782
      %v1026 = vsel %vm1018, %v1009, %v1025
      %v1027 = vsel %vm1017, %v1024, %v1026
      %v1028 = vsel %vm1016, %v1006, %v1009
      %v1029 = vsel %vm1019, %v1015, 1326507024
      %v1030 = vsel %vm1018, %v1012, %v1029
      %v1031 = vsel %vm1017, %v1028, %v1030
      %v1032 = vshll.u32 %v992, 8
      %v1033 = vand.u32 %v1032, 65535
      %v1034 = vshrl.u32 %v1032, 16
      %v1035 = vand.u32 %v1031, 65535
      %v1036 = vshrl.u32 %v1031, 16
      %v1037 = vmul.u32 %v1033, %v1035
      %v1038 = vmul.u32 %v1033, %v1036
      %v1039 = vmul.u32 %v1034, %v1035
      %v1040 = vmul.u32 %v1034, %v1036
      %v1041 = vshll.u32 %v1038, 16
      %v1042 = vshrl.u32 %v1038, 16
      %v1043 = vshll.u32 %v1039, 16
      %v1044 = vshrl.u32 %v1039, 16
      %vm1045 = vc.u32 %v1037, %v1041
      %v1046 = vsel %vm1045, 1, 0
      %v1047 = vadd.s32 %v1037, %v1041
      %v1048 = vadd.s32 %v1040, %v1046
      %vm1049 = vc.u32 %v1047, %v1043
      %v1050 = vsel %vm1049, 1, 0
      %v1051 = vadd.s32 %v1047, %v1043
      %v1052 = vadd.s32 %v1048, %v1050
      %v1053 = vadd.s32 %v1052, %v1042
      %v1054 = vadd.s32 %v1053, %v1044
      %v1055 = vand.u32 %v1032, 65535
      %v1056 = vshrl.u32 %v1032, 16
      %v1057 = vand.u32 %v1027, 65535
      %v1058 = vshrl.u32 %v1027, 16
      %v1059 = vmul.u32 %v1055, %v1057
      %v1060 = vmul.u32 %v1055, %v1058
      %v1061 = vmul.u32 %v1056, %v1057
      %v1062 = vmul.u32 %v1056, %v1058
      %v1063 = vshll.u32 %v1060, 16
      %v1064 = vshrl.u32 %v1060, 16
      %v1065 = vshll.u32 %v1061, 16
      %v1066 = vshrl.u32 %v1061, 16
      %vm1067 = vc.u32 %v1059, %v1063
      %v1068 = vsel %vm1067, 1, 0
      %v1069 = vadd.s32 %v1059, %v1063
      %v1070 = vadd.s32 %v1062, %v1068
      %vm1071 = vc.u32 %v1069, %v1065
      %v1072 = vsel %vm1071, 1, 0
      %v1073 = vadd.s32 %v1069, %v1065
      %v1074 = vadd.s32 %v1070, %v1072
      %v1075 = vadd.s32 %v1074, %v1064
      %v1076 = vadd.s32 %v1075, %v1066
      %v1077 = vmul.u32 %v1032, %v1023
      %v1078 = vadd.s32 %v1054, %v1073
      %vm1079 = vc.u32 %v1054, %v1073
      %v1080 = vadd.s32 %v1076, 1
      %v1081 = vsel %vm1079, %v1080, %v1076
      %v1082 = vadd.s32 %v1077, %v1081
      %v1083 = vadd.s32 %v1082, 536870912
      %v1084 = vshrl.u32 %v1083, 30
      %v1085 = vshll.u32 %v1084, 30
      %v1086 = vsub.s32 %v1082, %v1085
      %vm1087 = vcmp.lt.s32.totalorder %v1086, 0
      %v1088 = vsub.s32 0, %v1086
      %v1089 = vsel %vm1087, %v1088, %v1086
      %v1090 = vclz %v1089
      %v1091 = vsub.s32 %v1090, 2
      %vm1092 = vcmp.gt.s32.totalorder 0, %v1091
      %v1093 = vsel %vm1092, 0, %v1091
      %v1094 = vsub.s32 32, %v1093
      %v1095 = vshll.u32 %v1086, %v1093
      %v1096 = vshrl.u32 %v1078, %v1094
      %v1097 = vor.u32 %v1095, %v1096
      %v1098 = vsub.s32 4294967266, %v1093
      %v1099 = vadd.s32 %v1098, 127
      %v1100 = vshll.u32 %v1099, 23
      %v1101 = vor.u32 4788187, %v1100
      %v1102 = vand.u32 2147483647, %v1101
      %v1104 = vcvt.s32.f32 %v1097
      %v1105 = vmul.f32 %v1104, %v1102
      %v1106 = vxor.u32 %v1105, 2147483648
      %v1107 = vsel %vm986, %v1106, %v1105
      %v1108 = vsub.s32 4, %v1084
      %v1109 = vsel %vm986, %v1108, %v1084
      %v1110 = vsel %vm985, %v360, %v1107
      %v1111 = vsel %vm985, 0, %v1109
      %v1112 = vmul.f32 %v1110, %v1110
      %v1113 = vmul.f32 %v1112, -0.001358992
      %v1114 = vadd.f32 %v1113, 0.041655596
      %v1115 = vmul.f32 %v1112, %v1114
      %v1116 = vadd.f32 %v1115, -0.4999988
      %v1117 = vmul.f32 %v1112, %v1116
      %v1118 = vadd.f32 1.0, %v1117
      %v1119 = vmul.f32 %v1110, %v1110
      %v1120 = vmul.f32 %v1119, -0.00019511016
      %v1121 = vadd.f32 %v1120, 0.008332121
      %v1122 = vmul.f32 %v1119, %v1121
      %v1123 = vadd.f32 %v1122, -0.16666654
      %v1124 = vmul.f32 %v1119, %v1123
      %v1125 = vadd.f32 %v1124, 1.0
      %v1126 = vmul.f32 %v1125, %v1110
      %vm1127 = vweird.f32 %v360
      %v1128 = vadd.s32 %v1111, 3
      %v1129 = vand.u32 %v1128, 3
      %vm1130 = vcmp.lt.s32.totalorder %v1129, 2
      %vm1131 = vcmp.eq.s32.totalorder %v1129, 0
      %v1132 = vxor.u32 %v1126, 2147483648
      %v1133 = vsel %vm1131, %v1118, %v1132
      %vm1134 = vcmp.eq.s32.totalorder %v1129, 2
      %v1135 = vxor.u32 %v1118, 2147483648
      %v1136 = vsel %vm1134, %v1135, %v1126
      %v1137 = vsel %vm1130, %v1133, %v1136
      %v1138 = vsel %vm1127, nan, %v1137
      %v1139 = vand.u32 2147483647, %v361
      %vm1140 = vcmp.le.f32.partialorder %v1139, 0.7853982
      %vm1141 = vcmp.lt.s32.totalorder %v361, 0
      %v1142 = vand.u32 %v361, 2139095040
      %v1143 = vshrl.u32 %v1142, 23
      %v1144 = vsub.s32 %v1143, 127
      %v1145 = vand.u32 2147483647, %v361
      %v1146 = vand.u32 %v1145, 8388607
      %v1147 = vor.u32 %v1146, 8388608
      %v1148 = vsub.s32 0, %v1147
      %v1149 = vadd.s32 %v1144, 1
      %vm1150 = vcmp.gt.s32.totalorder %v1149, 0
      %v1151 = vsel %vm1150, %v1149, 0
      %v1152 = vshrl.u32 %v1151, 5
      %v1153 = vand.u32 %v1151, 31
      %v1154 = vsub.s32 32, %v1153
      %v1155 = vshrl.u32 683565275, %v1154
      %v1156 = vshll.u32 683565275, %v1153
      %v1157 = vshrl.u32 2475754826, %v1154
      %v1158 = vor.u32 %v1156, %v1157
      %v1159 = vshll.u32 2475754826, %v1153
      %v1160 = vshrl.u32 2131351028, %v1154
      %v1161 = vor.u32 %v1159, %v1160
      %v1162 = vshll.u32 2131351028, %v1153
      %v1163 = vshrl.u32 2102212464, %v1154
      %v1164 = vor.u32 %v1162, %v1163
      %v1165 = vshll.u32 2102212464, %v1153
      %v1166 = vshrl.u32 920167782, %v1154
      %v1167 = vor.u32 %v1165, %v1166
      %v1168 = vshll.u32 920167782, %v1153
      %v1169 = vshrl.u32 1326507024, %v1154
      %v1170 = vor.u32 %v1168, %v1169
      %vm1171 = vcmp.lt.s32.totalorder %v1152, 1
      %vm1172 = vcmp.lt.s32.totalorder %v1152, 2
      %vm1173 = vcmp.lt.s32.totalorder %v1152, 3
      %vm1174 = vcmp.lt.s32.totalorder %v1152, 4
      %v1175 = vsel %vm1171, %v1155, %v1158
      %v1176 = vsel %vm1174, %v1164, 2102212464
      %v1177 = vsel %vm1173, %v1161, %v1176
      %v1178 = vsel %vm1172, %v1175, %v1177
      %v1179 = vsel %vm1171, %v1158, %v1161
      %v1180 = vsel %vm1174, %v1167, 920167782
      %v1181 = vsel %vm1173, %v1164, %v1180
      %v1182 = vsel %vm1172, %v1179, %v1181
      %v1183 = vsel %vm1171, %v1161, %v1164
      %v1184 = vsel %vm1174, %v1170, 1326507024
      %v1185 = vsel %vm1173, %v1167, %v1184
      %v1186 = vsel %vm1172, %v1183, %v1185
      %v1187 = vshll.u32 %v1147, 8
      %v1188 = vand.u32 %v1187, 65535
      %v1189 = vshrl.u32 %v1187, 16
      %v1190 = vand.u32 %v1186, 65535
      %v1191 = vshrl.u32 %v1186, 16
      %v1192 = vmul.u32 %v1188, %v1190
      %v1193 = vmul.u32 %v1188, %v1191
      %v1194 = vmul.u32 %v1189, %v1190
      %v1195 = vmul.u32 %v1189, %v1191
      %v1196 = vshll.u32 %v1193, 16
      %v1197 = vshrl.u32 %v1193, 16
      %v1198 = vshll.u32 %v1194, 16
      %v1199 = vshrl.u32 %v1194, 16
      %vm1200 = vc.u32 %v1192, %v1196
      %v1201 = vsel %vm1200, 1, 0
      %v1202 = vadd.s32 %v1192, %v1196
      %v1203 = vadd.s32 %v1195, %v1201
      %vm1204 = vc.u32 %v1202, %v1198
      %v1205 = vsel %vm1204, 1, 0
      %v1206 = vadd.s32 %v1202, %v1198
      %v1207 = vadd.s32 %v1203, %v1205
      %v1208 = vadd.s32 %v1207, %v1197
      %v1209 = vadd.s32 %v1208, %v1199
      %v1210 = vand.u32 %v1187, 65535
      %v1211 = vshrl.u32 %v1187, 16
      %v1212 = vand.u32 %v1182, 65535
      %v1213 = vshrl.u32 %v1182, 16
      %v1214 = vmul.u32 %v1210, %v1212
      %v1215 = vmul.u32 %v1210, %v1213
      %v1216 = vmul.u32 %v1211, %v1212
      %v1217 = vmul.u32 %v1211, %v1213
      %v1218 = vshll.u32 %v1215, 16
      %v1219 = vshrl.u32 %v1215, 16
      %v1220 = vshll.u32 %v1216, 16
      %v1221 = vshrl.u32 %v1216, 16
      %vm1222 = vc.u32 %v1214, %v1218
      %v1223 = vsel %vm1222, 1, 0
      %v1224 = vadd.s32 %v1214, %v1218
      %v1225 = vadd.s32 %v1217, %v1223
      %vm1226 = vc.u32 %v1224, %v1220
      %v1227 = vsel %vm1226, 1, 0
      %v1228 = vadd.s32 %v1224, %v1220
      %v1229 = vadd.s32 %v1225, %v1227
      %v1230 = vadd.s32 %v1229, %v1219
      %v1231 = vadd.s32 %v1230, %v1221
      %v1232 = vmul.u32 %v1187, %v1178
      %v1233 = vadd.s32 %v1209, %v1228
      %vm1234 = vc.u32 %v1209, %v1228
      %v1235 = vadd.s32 %v1231, 1
      %v1236 = vsel %vm1234, %v1235, %v1231
      %v1237 = vadd.s32 %v1232, %v1236
      %v1238 = vadd.s32 %v1237, 536870912
      %v1239 = vshrl.u32 %v1238, 30
      %v1240 = vshll.u32 %v1239, 30
      %v1241 = vsub.s32 %v1237, %v1240
      %vm1242 = vcmp.lt.s32.totalorder %v1241, 0
      %v1243 = vsub.s32 0, %v1241
      %v1244 = vsel %vm1242, %v1243, %v1241
      %v1245 = vclz %v1244
      %v1246 = vsub.s32 %v1245, 2
      %vm1247 = vcmp.gt.s32.totalorder 0, %v1246
      %v1248 = vsel %vm1247, 0, %v1246
      %v1249 = vsub.s32 32, %v1248
      %v1250 = vshll.u32 %v1241, %v1248
      %v1251 = vshrl.u32 %v1233, %v1249
      %v1252 = vor.u32 %v1250, %v1251
      %v1253 = vsub.s32 4294967266, %v1248
      %v1254 = vadd.s32 %v1253, 127
      %v1255 = vshll.u32 %v1254, 23
      %v1256 = vor.u32 4788187, %v1255
      %v1257 = vand.u32 2147483647, %v1256
      %v1259 = vcvt.s32.f32 %v1252
      %v1260 = vmul.f32 %v1259, %v1257
      %v1261 = vxor.u32 %v1260, 2147483648
      %v1262 = vsel %vm1141, %v1261, %v1260
      %v1263 = vsub.s32 4, %v1239
      %v1264 = vsel %vm1141, %v1263, %v1239
      %v1265 = vsel %vm1140, %v361, %v1262
      %v1266 = vsel %vm1140, 0, %v1264
      %v1267 = vmul.f32 %v1265, %v1265
      %v1268 = vmul.f32 %v1267, -0.001358992
      %v1269 = vadd.f32 %v1268, 0.041655596
      %v1270 = vmul.f32 %v1267, %v1269
      %v1271 = vadd.f32 %v1270, -0.4999988
      %v1272 = vmul.f32 %v1267, %v1271
      %v1273 = vadd.f32 1.0, %v1272
      %v1274 = vmul.f32 %v1265, %v1265
      %v1275 = vmul.f32 %v1274, -0.00019511016
      %v1276 = vadd.f32 %v1275, 0.008332121
      %v1277 = vmul.f32 %v1274, %v1276
      %v1278 = vadd.f32 %v1277, -0.16666654
      %v1279 = vmul.f32 %v1274, %v1278
      %v1280 = vadd.f32 %v1279, 1.0
      %v1281 = vmul.f32 %v1280, %v1265
      %vm1282 = vweird.f32 %v361
      %v1283 = vadd.s32 %v1266, 3
      %v1284 = vand.u32 %v1283, 3
      %vm1285 = vcmp.lt.s32.totalorder %v1284, 2
      %vm1286 = vcmp.eq.s32.totalorder %v1284, 0
      %v1287 = vxor.u32 %v1281, 2147483648
      %v1288 = vsel %vm1286, %v1273, %v1287
      %vm1289 = vcmp.eq.s32.totalorder %v1284, 2
      %v1290 = vxor.u32 %v1273, 2147483648
      %v1291 = vsel %vm1289, %v1290, %v1281
      %v1292 = vsel %vm1285, %v1288, %v1291
      %v1293 = vsel %vm1282, nan, %v1292
      %v1294 = vand.u32 2147483647, %v362
      %vm1295 = vcmp.le.f32.partialorder %v1294, 0.7853982
      %vm1296 = vcmp.lt.s32.totalorder %v362, 0
      %v1297 = vand.u32 %v362, 2139095040
      %v1298 = vshrl.u32 %v1297, 23
      %v1299 = vsub.s32 %v1298, 127
      %v1300 = vand.u32 2147483647, %v362
      %v1301 = vand.u32 %v1300, 8388607
      %v1302 = vor.u32 %v1301, 8388608
      %v1303 = vsub.s32 0, %v1302
      %v1304 = vadd.s32 %v1299, 1
      %vm1305 = vcmp.gt.s32.totalorder %v1304, 0
      %v1306 = vsel %vm1305, %v1304, 0
      %v1307 = vshrl.u32 %v1306, 5
      %v1308 = vand.u32 %v1306, 31
      %v1309 = vsub.s32 32, %v1308
      %v1310 = vshrl.u32 683565275, %v1309
      %v1311 = vshll.u32 683565275, %v1308
      %v1312 = vshrl.u32 2475754826, %v1309
      %v1313 = vor.u32 %v1311, %v1312
      %v1314 = vshll.u32 2475754826, %v1308
      %v1315 = vshrl.u32 2131351028, %v1309
      %v1316 = vor.u32 %v1314, %v1315
      %v1317 = vshll.u32 2131351028, %v1308
      %v1318 = vshrl.u32 2102212464, %v1309
      %v1319 = vor.u32 %v1317, %v1318
      %v1320 = vshll.u32 2102212464, %v1308
      %v1321 = vshrl.u32 920167782, %v1309
      %v1322 = vor.u32 %v1320, %v1321
      %v1323 = vshll.u32 920167782, %v1308
      %v1324 = vshrl.u32 1326507024, %v1309
      %v1325 = vor.u32 %v1323, %v1324
      %vm1326 = vcmp.lt.s32.totalorder %v1307, 1
      %vm1327 = vcmp.lt.s32.totalorder %v1307, 2
      %vm1328 = vcmp.lt.s32.totalorder %v1307, 3
      %vm1329 = vcmp.lt.s32.totalorder %v1307, 4
      %v1330 = vsel %vm1326, %v1310, %v1313
      %v1331 = vsel %vm1329, %v1319, 2102212464
      %v1332 = vsel %vm1328, %v1316, %v1331
      %v1333 = vsel %vm1327, %v1330, %v1332
      %v1334 = vsel %vm1326, %v1313, %v1316
      %v1335 = vsel %vm1329, %v1322, 920167782
      %v1336 = vsel %vm1328, %v1319, %v1335
      %v1337 = vsel %vm1327, %v1334, %v1336
      %v1338 = vsel %vm1326, %v1316, %v1319
      %v1339 = vsel %vm1329, %v1325, 1326507024
      %v1340 = vsel %vm1328, %v1322, %v1339
      %v1341 = vsel %vm1327, %v1338, %v1340
      %v1342 = vshll.u32 %v1302, 8
      %v1343 = vand.u32 %v1342, 65535
      %v1344 = vshrl.u32 %v1342, 16
      %v1345 = vand.u32 %v1341, 65535
      %v1346 = vshrl.u32 %v1341, 16
      %v1347 = vmul.u32 %v1343, %v1345
      %v1348 = vmul.u32 %v1343, %v1346
      %v1349 = vmul.u32 %v1344, %v1345
      %v1350 = vmul.u32 %v1344, %v1346
      %v1351 = vshll.u32 %v1348, 16
      %v1352 = vshrl.u32 %v1348, 16
      %v1353 = vshll.u32 %v1349, 16
      %v1354 = vshrl.u32 %v1349, 16
      %vm1355 = vc.u32 %v1347, %v1351
      %v1356 = vsel %vm1355, 1, 0
      %v1357 = vadd.s32 %v1347, %v1351
      %v1358 = vadd.s32 %v1350, %v1356
      %vm1359 = vc.u32 %v1357, %v1353
      %v1360 = vsel %vm1359, 1, 0
      %v1361 = vadd.s32 %v1357, %v1353
      %v1362 = vadd.s32 %v1358, %v1360
      %v1363 = vadd.s32 %v1362, %v1352
      %v1364 = vadd.s32 %v1363, %v1354
      %v1365 = vand.u32 %v1342, 65535
      %v1366 = vshrl.u32 %v1342, 16
      %v1367 = vand.u32 %v1337, 65535
      %v1368 = vshrl.u32 %v1337, 16
      %v1369 = vmul.u32 %v1365, %v1367
      %v1370 = vmul.u32 %v1365, %v1368
      %v1371 = vmul.u32 %v1366, %v1367
      %v1372 = vmul.u32 %v1366, %v1368
      %v1373 = vshll.u32 %v1370, 16
      %v1374 = vshrl.u32 %v1370, 16
      %v1375 = vshll.u32 %v1371, 16
      %v1376 = vshrl.u32 %v1371, 16
      %vm1377 = vc.u32 %v1369, %v1373
      %v1378 = vsel %vm1377, 1, 0
      %v1379 = vadd.s32 %v1369, %v1373
      %v1380 = vadd.s32 %v1372, %v1378
      %vm1381 = vc.u32 %v1379, %v1375
      %v1382 = vsel %vm1381, 1, 0
      %v1383 = vadd.s32 %v1379, %v1375
      %v1384 = vadd.s32 %v1380, %v1382
      %v1385 = vadd.s32 %v1384, %v1374
      %v1386 = vadd.s32 %v1385, %v1376
      %v1387 = vmul.u32 %v1342, %v1333
      %v1388 = vadd.s32 %v1364, %v1383
      %vm1389 = vc.u32 %v1364, %v1383
      %v1390 = vadd.s32 %v1386, 1
      %v1391 = vsel %vm1389, %v1390, %v1386
      %v1392 = vadd.s32 %v1387, %v1391
      %v1393 = vadd.s32 %v1392, 536870912
      %v1394 = vshrl.u32 %v1393, 30
      %v1395 = vshll.u32 %v1394, 30
      %v1396 = vsub.s32 %v1392, %v1395
      %vm1397 = vcmp.lt.s32.totalorder %v1396, 0
      %v1398 = vsub.s32 0, %v1396
      %v1399 = vsel %vm1397, %v1398, %v1396
      %v1400 = vclz %v1399
      %v1401 = vsub.s32 %v1400, 2
      %vm1402 = vcmp.gt.s32.totalorder 0, %v1401
      %v1403 = vsel %vm1402, 0, %v1401
      %v1404 = vsub.s32 32, %v1403
      %v1405 = vshll.u32 %v1396, %v1403
      %v1406 = vshrl.u32 %v1388, %v1404
      %v1407 = vor.u32 %v1405, %v1406
      %v1408 = vsub.s32 4294967266, %v1403
      %v1409 = vadd.s32 %v1408, 127
      %v1410 = vshll.u32 %v1409, 23
      %v1411 = vor.u32 4788187, %v1410
      %v1412 = vand.u32 2147483647, %v1411
      %v1414 = vcvt.s32.f32 %v1407
      %v1415 = vmul.f32 %v1414, %v1412
      %v1416 = vxor.u32 %v1415, 2147483648
      %v1417 = vsel %vm1296, %v1416, %v1415
      %v1418 = vsub.s32 4, %v1394
      %v1419 = vsel %vm1296, %v1418, %v1394
      %v1420 = vsel %vm1295, %v362, %v1417
      %v1421 = vsel %vm1295, 0, %v1419
      %v1422 = vmul.f32 %v1420, %v1420
      %v1423 = vmul.f32 %v1422, -0.001358992
      %v1424 = vadd.f32 %v1423, 0.041655596
      %v1425 = vmul.f32 %v1422, %v1424
      %v1426 = vadd.f32 %v1425, -0.4999988
      %v1427 = vmul.f32 %v1422, %v1426
      %v1428 = vadd.f32 1.0, %v1427
      %v1429 = vmul.f32 %v1420, %v1420
      %v1430 = vmul.f32 %v1429, -0.00019511016
      %v1431 = vadd.f32 %v1430, 0.008332121
      %v1432 = vmul.f32 %v1429, %v1431
      %v1433 = vadd.f32 %v1432, -0.16666654
      %v1434 = vmul.f32 %v1429, %v1433
      %v1435 = vadd.f32 %v1434, 1.0
      %v1436 = vmul.f32 %v1435, %v1420
      %vm1437 = vweird.f32 %v362
      %v1438 = vadd.s32 %v1421, 3
      %v1439 = vand.u32 %v1438, 3
      %vm1440 = vcmp.lt.s32.totalorder %v1439, 2
      %vm1441 = vcmp.eq.s32.totalorder %v1439, 0
      %v1442 = vxor.u32 %v1436, 2147483648
      %v1443 = vsel %vm1441, %v1428, %v1442
      %vm1444 = vcmp.eq.s32.totalorder %v1439, 2
      %v1445 = vxor.u32 %v1428, 2147483648
      %v1446 = vsel %vm1444, %v1445, %v1436
      %v1447 = vsel %vm1440, %v1443, %v1446
      %v1448 = vsel %vm1437, nan, %v1447
      %v1449 = vand.u32 2147483647, %v363
      %vm1450 = vcmp.le.f32.partialorder %v1449, 0.7853982
      %vm1451 = vcmp.lt.s32.totalorder %v363, 0
      %v1452 = vand.u32 %v363, 2139095040
      %v1453 = vshrl.u32 %v1452, 23
      %v1454 = vsub.s32 %v1453, 127
      %v1455 = vand.u32 2147483647, %v363
      %v1456 = vand.u32 %v1455, 8388607
      %v1457 = vor.u32 %v1456, 8388608
      %v1458 = vsub.s32 0, %v1457
      %v1459 = vadd.s32 %v1454, 1
      %vm1460 = vcmp.gt.s32.totalorder %v1459, 0
      %v1461 = vsel %vm1460, %v1459, 0
      %v1462 = vshrl.u32 %v1461, 5
      %v1463 = vand.u32 %v1461, 31
      %v1464 = vsub.s32 32, %v1463
      %v1465 = vshrl.u32 683565275, %v1464
      %v1466 = vshll.u32 683565275, %v1463
      %v1467 = vshrl.u32 2475754826, %v1464
      %v1468 = vor.u32 %v1466, %v1467
      %v1469 = vshll.u32 2475754826, %v1463
      %v1470 = vshrl.u32 2131351028, %v1464
      %v1471 = vor.u32 %v1469, %v1470
      %v1472 = vshll.u32 2131351028, %v1463
      %v1473 = vshrl.u32 2102212464, %v1464
      %v1474 = vor.u32 %v1472, %v1473
      %v1475 = vshll.u32 2102212464, %v1463
      %v1476 = vshrl.u32 920167782, %v1464
      %v1477 = vor.u32 %v1475, %v1476
      %v1478 = vshll.u32 920167782, %v1463
      %v1479 = vshrl.u32 1326507024, %v1464
      %v1480 = vor.u32 %v1478, %v1479
      %vm1481 = vcmp.lt.s32.totalorder %v1462, 1
      %vm1482 = vcmp.lt.s32.totalorder %v1462, 2
      %vm1483 = vcmp.lt.s32.totalorder %v1462, 3
      %vm1484 = vcmp.lt.s32.totalorder %v1462, 4
      %v1485 = vsel %vm1481, %v1465, %v1468
      %v1486 = vsel %vm1484, %v1474, 2102212464
      %v1487 = vsel %vm1483, %v1471, %v1486
      %v1488 = vsel %vm1482, %v1485, %v1487
      %v1489 = vsel %vm1481, %v1468, %v1471
      %v1490 = vsel %vm1484, %v1477, 920167782
      %v1491 = vsel %vm1483, %v1474, %v1490
      %v1492 = vsel %vm1482, %v1489, %v1491
      %v1493 = vsel %vm1481, %v1471, %v1474
      %v1494 = vsel %vm1484, %v1480, 1326507024
      %v1495 = vsel %vm1483, %v1477, %v1494
      %v1496 = vsel %vm1482, %v1493, %v1495
      %v1497 = vshll.u32 %v1457, 8
      %v1498 = vand.u32 %v1497, 65535
      %v1499 = vshrl.u32 %v1497, 16
      %v1500 = vand.u32 %v1496, 65535
      %v1501 = vshrl.u32 %v1496, 16
      %v1502 = vmul.u32 %v1498, %v1500
      %v1503 = vmul.u32 %v1498, %v1501
      %v1504 = vmul.u32 %v1499, %v1500
      %v1505 = vmul.u32 %v1499, %v1501
      %v1506 = vshll.u32 %v1503, 16
      %v1507 = vshrl.u32 %v1503, 16
      %v1508 = vshll.u32 %v1504, 16
      %v1509 = vshrl.u32 %v1504, 16
      %vm1510 = vc.u32 %v1502, %v1506
      %v1511 = vsel %vm1510, 1, 0
      %v1512 = vadd.s32 %v1502, %v1506
      %v1513 = vadd.s32 %v1505, %v1511
      %vm1514 = vc.u32 %v1512, %v1508
      %v1515 = vsel %vm1514, 1, 0
      %v1516 = vadd.s32 %v1512, %v1508
      %v1517 = vadd.s32 %v1513, %v1515
      %v1518 = vadd.s32 %v1517, %v1507
      %v1519 = vadd.s32 %v1518, %v1509
      %v1520 = vand.u32 %v1497, 65535
      %v1521 = vshrl.u32 %v1497, 16
      %v1522 = vand.u32 %v1492, 65535
      %v1523 = vshrl.u32 %v1492, 16
      %v1524 = vmul.u32 %v1520, %v1522
      %v1525 = vmul.u32 %v1520, %v1523
      %v1526 = vmul.u32 %v1521, %v1522
      %v1527 = vmul.u32 %v1521, %v1523
      %v1528 = vshll.u32 %v1525, 16
      %v1529 = vshrl.u32 %v1525, 16
      %v1530 = vshll.u32 %v1526, 16
      %v1531 = vshrl.u32 %v1526, 16
      %vm1532 = vc.u32 %v1524, %v1528
      %v1533 = vsel %vm1532, 1, 0
      %v1534 = vadd.s32 %v1524, %v1528
      %v1535 = vadd.s32 %v1527, %v1533
      %vm1536 = vc.u32 %v1534, %v1530
      %v1537 = vsel %vm1536, 1, 0
      %v1538 = vadd.s32 %v1534, %v1530
      %v1539 = vadd.s32 %v1535, %v1537
      %v1540 = vadd.s32 %v1539, %v1529
      %v1541 = vadd.s32 %v1540, %v1531
      %v1542 = vmul.u32 %v1497, %v1488
      %v1543 = vadd.s32 %v1519, %v1538
      %vm1544 = vc.u32 %v1519, %v1538
      %v1545 = vadd.s32 %v1541, 1
      %v1546 = vsel %vm1544, %v1545, %v1541
      %v1547 = vadd.s32 %v1542, %v1546
      %v1548 = vadd.s32 %v1547, 536870912
      %v1549 = vshrl.u32 %v1548, 30
      %v1550 = vshll.u32 %v1549, 30
      %v1551 = vsub.s32 %v1547, %v1550
      %vm1552 = vcmp.lt.s32.totalorder %v1551, 0
      %v1553 = vsub.s32 0, %v1551
      %v1554 = vsel %vm1552, %v1553, %v1551
      %v1555 = vclz %v1554
      %v1556 = vsub.s32 %v1555, 2
      %vm1557 = vcmp.gt.s32.totalorder 0, %v1556
      %v1558 = vsel %vm1557, 0, %v1556
      %v1559 = vsub.s32 32, %v1558
      %v1560 = vshll.u32 %v1551, %v1558
      %v1561 = vshrl.u32 %v1543, %v1559
      %v1562 = vor.u32 %v1560, %v1561
      %v1563 = vsub.s32 4294967266, %v1558
      %v1564 = vadd.s32 %v1563, 127
      %v1565 = vshll.u32 %v1564, 23
      %v1566 = vor.u32 4788187, %v1565
      %v1567 = vand.u32 2147483647, %v1566
      %v1569 = vcvt.s32.f32 %v1562
      %v1570 = vmul.f32 %v1569, %v1567
      %v1571 = vxor.u32 %v1570, 2147483648
      %v1572 = vsel %vm1451, %v1571, %v1570
      %v1573 = vsub.s32 4, %v1549
      %v1574 = vsel %vm1451, %v1573, %v1549
      %v1575 = vsel %vm1450, %v363, %v1572
      %v1576 = vsel %vm1450, 0, %v1574
      %v1577 = vmul.f32 %v1575, %v1575
      %v1578 = vmul.f32 %v1577, -0.001358992
      %v1579 = vadd.f32 %v1578, 0.041655596
      %v1580 = vmul.f32 %v1577, %v1579
      %v1581 = vadd.f32 %v1580, -0.4999988
      %v1582 = vmul.f32 %v1577, %v1581
      %v1583 = vadd.f32 1.0, %v1582
      %v1584 = vmul.f32 %v1575, %v1575
      %v1585 = vmul.f32 %v1584, -0.00019511016
      %v1586 = vadd.f32 %v1585, 0.008332121
      %v1587 = vmul.f32 %v1584, %v1586
      %v1588 = vadd.f32 %v1587, -0.16666654
      %v1589 = vmul.f32 %v1584, %v1588
      %v1590 = vadd.f32 %v1589, 1.0
      %v1591 = vmul.f32 %v1590, %v1575
      %vm1592 = vweird.f32 %v363
      %v1593 = vadd.s32 %v1576, 3
      %v1594 = vand.u32 %v1593, 3
      %vm1595 = vcmp.lt.s32.totalorder %v1594, 2
      %vm1596 = vcmp.eq.s32.totalorder %v1594, 0
      %v1597 = vxor.u32 %v1591, 2147483648
      %v1598 = vsel %vm1596, %v1583, %v1597
      %vm1599 = vcmp.eq.s32.totalorder %v1594, 2
      %v1600 = vxor.u32 %v1583, 2147483648
      %v1601 = vsel %vm1599, %v1600, %v1591
      %v1602 = vsel %vm1595, %v1598, %v1601
      %v1603 = vsel %vm1592, nan, %v1602
      %vm1604 = vcmp.lt.s32.totalorder %v183, 3
      %v1605 = vsel %vm1604, %v332, %v518
      %v1606 = vsel %vm1604, %v333, %v673
      %v1607 = vsel %vm1604, %v334, %v828
      %v1608 = vsel %vm1604, %v335, %v983
      %v1609 = vsel %vm1604, %v336, %v1138
      %v1610 = vsel %vm1604, %v337, %v1293
      %v1611 = vsel %vm1604, %v338, %v1448
      %v1612 = vsel %vm1604, %v339, %v1603
      %vm1613 = vcmask 220160
      %1614 = vst.msk [vmem:[%s172] sm:$0xff] %vm1613, %v1605
      %1615 = vst.msk [vmem:[%s172 + $0x8] sm:$0xff] %vm1613, %v1606
      %1616 = vst.msk [vmem:[%s172 + $0x10] sm:$0xff] %vm1613, %v1607
      %1617 = vst.msk [vmem:[%s172 + $0x18] sm:$0xff] %vm1613, %v1608
      %1618 = vst.msk [vmem:[%s172 + $0x20] sm:$0xff] %vm1613, %v1609
      %1619 = vst.msk [vmem:[%s172 + $0x28] sm:$0xff] %vm1613, %v1610
      %1620 = vst.msk [vmem:[%s172 + $0x30] sm:$0xff] %vm1613, %v1611
      %1621 = vst.msk [vmem:[%s172 + $0x38] sm:$0xff] %vm1613, %v1612
      %s1622 = smul.u32 8, %s14
      %p1623 = scmp.lt.s32.totalorder %s1622, 15
      %s1624 = scalar_select %p1623, %s1622, 15
      %s1625 = smul.addr %s1624, 8
      %s1626 = scalar_lea.vmem %s3, %s1625
      // Predicated region
      $region33: #{tpu_custom_call.1} parent=31 // pred_check
        %p1627 = pneg %p100
      $region34: #{tpu_custom_call.1} parent=31 // pred_check_branch
        %1629 = sbr.rel (%p1627) target = $region36
      $region35: #{tpu_custom_call.1} parent=31 // pred_region
        %s1630 = smul.u32 8, %s14
      $region36: #{tpu_custom_call.1} parent=31 // pred_fallthru
        _
    $region32: #{tpu_custom_call.1} parent=5 // pred_fallthru
      _
    %p1631 = scmp.le.s32.totalorder 2, %s9
    // Predicated region
    $region37: #{tpu_custom_call.1} parent=5 // pred_check
      %p1632 = pneg %p1631
    $region38: #{tpu_custom_call.1} parent=5 // pred_check_branch
      %1634 = sbr.rel (%p1632) target = $region40
    $region39: #{tpu_custom_call.1} parent=5 // pred_region
      %s1635 = ssub.s32 %s9, 2
      // Predicated region
      $region41: #{tpu_custom_call.1} parent=39 // pred_check
        %p1636 = pneg %p106
      $region42: #{tpu_custom_call.1} parent=39 // pred_check_branch
        %1638 = sbr.rel (%p1636) target = $region44
      $region43: #{tpu_custom_call.1} parent=39 // pred_region
        %s1639 = smul.u32 8, %s15
        %p1640 = scmp.lt.s32.totalorder %s1639, 15
        %s1641 = scalar_select %p1640, %s1639, 15
        %s1642 = smul.addr %s1641, 8
        %s1643 = scalar_lea.vmem %s3, %s1642
      $region44: #{tpu_custom_call.1} parent=39 // pred_fallthru
        _
    $region40: #{tpu_custom_call.1} parent=5 // pred_fallthru
      _
  $region6: #{tpu_custom_call.1} parent=0 // loop_footer
    %s13 = sadd.s32 1, %s9
  $region7: #{tpu_custom_call.1} parent=0 // loop_footer_branch
    %8 = sbr.rel target = $region3
  $region8: #{tpu_custom_call.1} parent=0 // loop_exit
    _

</llo_original>
